<compile_context>
chip_gen: v7x
topology: tpu7x:2x2x1
jax: 0.10.0
libtpu: 0.0.40
codegen_flags: <defaults>
</compile_context>

<pallas_src>
import functools

import jax
import jax.numpy as jnp
from jax import lax
from jax.experimental import pallas as pl
from jax.experimental.pallas import tpu as pltpu

_EPS = 1e-6


def _silu(v):
    return v * (1.0 / (1.0 + jnp.exp(-v)))


def _vmem_limit_bytes():
    # Explicit, generation-aware VMEM budget (review item): <=48 MiB, <=75% physical.
    try:
        cap = int(pltpu.get_tpu_info().vmem_capacity_bytes)
    except Exception:  # noqa: BLE001 - fall back to a conservative default
        cap = 64 * 1024 * 1024
    return int(min(48 * 1024 * 1024, (cap * 3) // 4))


def _fill_halo_gn_silu(x_ref, gm_ref, gamma_ref, beta_ref, hbuf):
    """SiLU(GroupNorm(x)) for one batch element into the zero-padded halo scratch.

    x_ref : (1, H, W, C)   unpadded input block (full channel extent)
    gm_ref: (C, C)         group-averaging matrix (1/(H*W*Cg) within a group)
    gamma_ref, beta_ref : (1, C)  GroupNorm affine params (f32)
    hbuf  : (H+2, W+2, C)  VMEM scratch; interior <- SiLU(GN(x)), ring <- 0
    """
    H, W, c = x_ref.shape[1], x_ref.shape[2], x_ref.shape[3]
    x = x_ref[0]                                                     # (H, W, C)
    # Two-pass (centered) statistics in f32: no E[x^2]-mean^2 cancellation.
    s1 = jnp.sum(x, axis=(0, 1), dtype=jnp.float32).reshape(1, c)
    mean = jnp.dot(s1, gm_ref[...], preferred_element_type=jnp.float32)   # (1, C)
    xc = x.astype(jnp.float32) - mean.reshape(1, 1, c)
    s2 = jnp.sum(xc * xc, axis=(0, 1)).reshape(1, c)
    var = jnp.dot(s2, gm_ref[...], preferred_element_type=jnp.float32)    # (1, C)
    scale = lax.rsqrt(var + _EPS) * gamma_ref[...]
    h = _silu(xc * scale.reshape(1, 1, c) + beta_ref[...].reshape(1, 1, c))
    hbuf[...] = jnp.zeros_like(hbuf)                                 # zero SAME-pad ring
    hbuf[1:H + 1, 1:W + 1, :] = h.astype(hbuf.dtype)


def _conv3x3_from_halo(hbuf, wf_ref, bc_ref):
    """3x3 SAME conv of the halo'd tile as 3 accumulated MXU matmuls.

    hbuf  : (H+2, W+2, Cin)  VMEM scratch holding SiLU(GN(x)) with zero ring
    wf_ref: (3, 3*Cin, tCo)  folded weights: wf[kw, kh*Cin + c, o] = w[kh, kw, c, o]
    bc_ref: (1, tCo)         conv bias slice
    returns f32 (H*W, tCo)
    """
    Hp, Wp, cin = hbuf.shape
    H, W = Hp - 2, Wp - 2
    hb = hbuf[...]
    acc = bc_ref[...].astype(jnp.float32)                            # (1, tCo) broadcast
    for dc in range(3):                                              # static kw unroll
        slab = jnp.concatenate(
            [hb[dr:dr + H, dc:dc + W, :] for dr in range(3)], axis=-1)
        acc = acc + jnp.dot(slab.reshape(H * W, 3 * cin), wf_ref[dc],
                            preferred_element_type=jnp.float32)
    return acc                                                       # (H*W, tCo)


def _stage0_kernel(x_ref, gm_ref, gamma_ref, beta_ref, wf_ref, bc_ref, o_ref, hbuf):
    # act(GN_0(x)) -> Conv_0   (temb=None path)
    @pl.when(pl.program_id(1) == 0)
    def _():
        _fill_halo_gn_silu(x_ref, gm_ref, gamma_ref, beta_ref, hbuf)
    acc = _conv3x3_from_halo(hbuf, wf_ref, bc_ref)
    H, W = x_ref.shape[1], x_ref.shape[2]
    o_ref[0] = acc.reshape(H, W, -1).astype(o_ref.dtype)


def _stage0_temb_kernel(x_ref, gm_ref, gamma_ref, beta_ref, wf_ref, bc_ref, tb_ref,
                        o_ref, hbuf):
    # act(GN_0(x)) -> Conv_0, + hoisted Dense_0(act(temb)) per-channel bias.
    @pl.when(pl.program_id(1) == 0)
    def _():
        _fill_halo_gn_silu(x_ref, gm_ref, gamma_ref, beta_ref, hbuf)
    acc = _conv3x3_from_halo(hbuf, wf_ref, bc_ref)
    acc = acc + tb_ref[0].astype(jnp.float32)                        # (1, tCo)
    H, W = x_ref.shape[1], x_ref.shape[2]
    o_ref[0] = acc.reshape(H, W, -1).astype(o_ref.dtype)


def _stage1_identity_kernel(h_ref, gm_ref, gamma_ref, beta_ref, wf_ref, bc_ref,
                            skip_ref, o_ref, hbuf, *, res_scale):
    # act(GN_1(h)) -> Dropout(eval: identity) -> Conv_1, + fused identity shortcut.
    @pl.when(pl.program_id(1) == 0)
    def _():
        _fill_halo_gn_silu(h_ref, gm_ref, gamma_ref, beta_ref, hbuf)
    acc = _conv3x3_from_halo(hbuf, wf_ref, bc_ref)
    H, W = h_ref.shape[1], h_ref.shape[2]
    tco = acc.shape[-1]
    acc = (acc + skip_ref[0].astype(jnp.float32).reshape(H * W, tco)) * res_scale
    o_ref[0] = acc.reshape(H, W, tco).astype(o_ref.dtype)


def _stage1_nin_kernel(h_ref, gm_ref, gamma_ref, beta_ref, wf_ref, bc_ref,
                       x_ref, ninw_ref, ninb_ref, o_ref, hbuf, *, res_scale):
    # act(GN_1(h)) -> Dropout(eval) -> Conv_1, + fused NIN_0(x) (1x1) shortcut.
    @pl.when(pl.program_id(1) == 0)
    def _():
        _fill_halo_gn_silu(h_ref, gm_ref, gamma_ref, beta_ref, hbuf)
    acc = _conv3x3_from_halo(hbuf, wf_ref, bc_ref)
    H, W, cin = x_ref.shape[1], x_ref.shape[2], x_ref.shape[3]
    x2 = x_ref[0].astype(ninw_ref.dtype).reshape(H * W, cin)
    sk = jnp.dot(x2, ninw_ref[...], preferred_element_type=jnp.float32)
    acc = (acc + sk + ninb_ref[...].astype(jnp.float32)) * res_scale
    o_ref[0] = acc.reshape(H, W, -1).astype(o_ref.dtype)


def _base_specs(H, W, cin, t_co):
    return [
        pl.BlockSpec((1, H, W, cin), lambda b, co: (b, 0, 0, 0)),     # x / h (full C)
        pl.BlockSpec((cin, cin), lambda b, co: (0, 0)),               # group matrix
        pl.BlockSpec((1, cin), lambda b, co: (0, 0)),                 # gamma
        pl.BlockSpec((1, cin), lambda b, co: (0, 0)),                 # beta
        pl.BlockSpec((3, 3 * cin, t_co), lambda b, co: (0, 0, co)),   # folded conv w
        pl.BlockSpec((1, t_co), lambda b, co: (0, co)),               # conv bias
    ]


def _stage_call(kernel, inputs, in_specs, B, H, W, cin, cout, t_co, out_dtype,
                mxu_dtype):
    n_co = cout // t_co
    return pl.pallas_call(
        kernel,
        out_shape=jax.ShapeDtypeStruct((B, H, W, cout), out_dtype),
        grid_spec=pltpu.PrefetchScalarGridSpec(
            num_scalar_prefetch=0,
            grid=(B, n_co),
            in_specs=list(in_specs),
            out_specs=pl.BlockSpec((1, H, W, t_co), lambda b, co: (b, 0, 0, co)),
            scratch_shapes=[pltpu.VMEM((H + 2, W + 2, cin), mxu_dtype)],
        ),
        compiler_params=pltpu.CompilerParams(
            # batch stays 'parallel' (megacore); Cout tiles are 'arbitrary' so the
            # GN/SiLU halo scratch filled at co==0 is reused for co>0.
            dimension_semantics=("parallel", "arbitrary"),
            vmem_limit_bytes=_vmem_limit_bytes()),
    )(*inputs)


def _group_avg_matrix(channels, groups, hw):
    """M[i, j] = 1/(H*W*Cg) if channels i, j share a group, else 0 (host-side)."""
    cg = channels // groups
    gid = jnp.arange(channels) // cg
    same = (gid[:, None] == gid[None, :]).astype(jnp.float32)
    return same / float(hw * cg)


def _fold_conv_w(w_hwio, mxu_dtype):
    # (3, 3, Cin, Cout) HWIO -> (3[kw], 3*Cin[kh*Cin + c], Cout): matches the per-kw
    # slab layout built inside the kernel (dr outer, channel inner).
    kh, kw, cin, cout = w_hwio.shape
    return jnp.transpose(w_hwio, (1, 0, 2, 3)).reshape(kw, kh * cin, cout).astype(mxu_dtype)


def resnet_block_ddpmpp(x_nchw, params, temb=None, *, skip_rescale=False,
                        mxu_dtype=None):
    """Forward pass of ResnetBlockDDPMpp (act = SiLU, Dropout in eval mode)."""
    B, C, H, W = x_nchw.shape
    w0, w1 = params["conv0_w"], params["conv1_w"]
    cin, cout = w0.shape[2], w0.shape[3]
    assert C == cin
    dtype = x_nchw.dtype
    # Set mxu_dtype=jnp.bfloat16 on v5e/v6e/v7x for f32 models (bf16-native MXU;
    # halves scratch/weight VMEM).  Demo keeps the model dtype for exact f32 parity.
    mxu_dtype = dtype if mxu_dtype is None else mxu_dtype

    # Cout tile: 256 fills the 256-wide MXU on v6e/v7x, 128 otherwise; fall back to
    # full Cout for channel counts that are not 128-multiples (e.g. 192, or the demo).
    if cout % 256 == 0:
        t_co = 256
    elif cout % 128 == 0:
        t_co = 128
    else:
        t_co = cout

    g0 = min(cin // 4, 32)
    g1 = min(cout // 4, 32)

    # Host-side, grid-invariant precomputation (folded weights, GN group matrices).
    gm0 = _group_avg_matrix(cin, g0, H * W)
    gm1 = _group_avg_matrix(cout, g1, H * W)
    wf0 = _fold_conv_w(w0, mxu_dtype)
    wf1 = _fold_conv_w(w1, mxu_dtype)
    gamma0 = params["gn0_gamma"].reshape(1, cin).astype(jnp.float32)
    beta0 = params["gn0_beta"].reshape(1, cin).astype(jnp.float32)
    gamma1 = params["gn1_gamma"].reshape(1, cout).astype(jnp.float32)
    beta1 = params["gn1_beta"].reshape(1, cout).astype(jnp.float32)
    bc0 = params["conv0_b"].reshape(1, cout).astype(jnp.float32)
    bc1 = params["conv1_b"].reshape(1, cout).astype(jnp.float32)

    # Layout glue: NCHW -> NHWC (channels on lanes).  No host-side padding.
    x_nhwc = jnp.transpose(x_nchw, (0, 2, 3, 1))

    # ---- Stage 0: act(GN_0(x)) -> Conv_0 (+ hoisted temb projection bias). ----
    base0 = _base_specs(H, W, cin, t_co)
    if temb is not None:
        # Hoisted Dense_0(act(temb)): one tiny (B,Td)x(Td,Cout) matmul in the wrapper.
        tb = jnp.dot(_silu(temb.astype(jnp.float32)),
                     params["dense_w"].astype(jnp.float32),
                     precision=lax.Precision.HIGHEST)
        tb = (tb + params["dense_b"].astype(jnp.float32)).reshape(B, 1, cout)
        inputs0 = (x_nhwc, gm0, gamma0, beta0, wf0, bc0, tb)
        specs0 = base0 + [pl.BlockSpec((1, 1, t_co), lambda b, co: (b, 0, co))]
        k0 = _stage0_temb_kernel
    else:
        inputs0, specs0, k0 = (x_nhwc, gm0, gamma0, beta0, wf0, bc0), base0, _stage0_kernel

    h1 = _stage_call(k0, inputs0, specs0, B, H, W, cin, cout, t_co, dtype, mxu_dtype)

    # ---- Stage 1: act(GN_1(h)) -> Dropout(eval) -> Conv_1, fused shortcut. ----
    res_scale = (2.0 ** -0.5) if skip_rescale else 1.0
    base1 = _base_specs(H, W, cout, t_co)
    if cin == cout:
        k1 = functools.partial(_stage1_identity_kernel, res_scale=res_scale)
        inputs1 = (h1, gm1, gamma1, beta1, wf1, bc1, x_nhwc)
        specs1 = base1 + [pl.BlockSpec((1, H, W, t_co), lambda b, co: (b, 0, 0, co))]
    else:
        # NIN_0 (1x1 channel mix) shortcut fused into stage 1 (conv_shortcut=False).
        # TODO(synk): conv_shortcut=True (Conv_2) shortcut variant is not implemented.
        k1 = functools.partial(_stage1_nin_kernel, res_scale=res_scale)
        inputs1 = (h1, gm1, gamma1, beta1, wf1, bc1, x_nhwc,
                   params["nin_w"].reshape(cin, cout).astype(mxu_dtype),
                   params["nin_b"].reshape(1, cout).astype(jnp.float32))
        specs1 = base1 + [
            pl.BlockSpec((1, H, W, cin), lambda b, co: (b, 0, 0, 0)),
            pl.BlockSpec((cin, t_co), lambda b, co: (0, co)),
            pl.BlockSpec((1, t_co), lambda b, co: (0, co)),
        ]

    out_nhwc = _stage_call(k1, inputs1, specs1, B, H, W, cout, cout, t_co, dtype,
                           mxu_dtype)
    return jnp.transpose(out_nhwc, (0, 3, 1, 2)), temb


if __name__ == "__main__":
    key = jax.random.PRNGKey(0)
    B, C, H, W = 2, 4, 16, 16
    out_ch = C                 # module default: out_ch = in_ch (identity shortcut)
    temb_dim = 32

    ks = jax.random.split(key, 12)
    x = jax.random.normal(ks[0], (B, C, H, W), jnp.float32)
    temb = jax.random.normal(ks[1], (B, temb_dim), jnp.float32)

    def vs_uniform(k, shape, fan_in, fan_out):
        # default_init(): variance_scaling(1., 'fan_avg', 'uniform')
        limit = (3.0 / ((fan_in + fan_out) / 2.0)) ** 0.5
        return jax.random.uniform(k, shape, jnp.float32, -limit, limit)

    params = {
        "gn0_gamma": 1.0 + 0.1 * jax.random.normal(ks[2], (C,), jnp.float32),
        "gn0_beta": 0.1 * jax.random.normal(ks[3], (C,), jnp.float32),
        "conv0_w": vs_uniform(ks[4], (3, 3, C, out_ch), 9 * C, 9 * out_ch),
        "conv0_b": 0.1 * jax.random.normal(ks[5], (out_ch,), jnp.float32),
        "dense_w": vs_uniform(ks[6], (temb_dim, out_ch), temb_dim, out_ch),
        "dense_b": 0.1 * jax.random.normal(ks[7], (out_ch,), jnp.float32),
        "gn1_gamma": 1.0 + 0.1 * jax.random.normal(ks[8], (out_ch,), jnp.float32),
        "gn1_beta": 0.1 * jax.random.normal(ks[9], (out_ch,), jnp.float32),
        "conv1_w": vs_uniform(ks[10], (3, 3, out_ch, out_ch), 9 * out_ch, 9 * out_ch),
        "conv1_b": 0.1 * jax.random.normal(ks[11], (out_ch,), jnp.float32),
    }

    y, _ = resnet_block_ddpmpp(x, params, temb, skip_rescale=False)
    y = jax.block_until_ready(y)

    # Pure-JAX reference of the same forward pass.
    def silu(v):
        return v * (1.0 / (1.0 + jnp.exp(-v)))

    def gn(v, gamma, beta, groups):
        b, c, hh, ww = v.shape
        vg = v.reshape(b, groups, (c // groups) * hh * ww)
        mean = jnp.mean(vg, axis=2, keepdims=True)
        var = jnp.mean((vg - mean) ** 2, axis=2, keepdims=True)
        vn = ((vg - mean) / jnp.sqrt(var + 1e-6)).reshape(b, c, hh, ww)
        return vn * gamma[None, :, None, None] + beta[None, :, None, None]

    def conv3x3(v, w_hwio, bias):
        yy = lax.conv_general_dilated(
            v, w_hwio, (1, 1), ((1, 1), (1, 1)),
            dimension_numbers=("NCHW", "HWIO", "NCHW"),
            precision=lax.Precision.HIGHEST)
        return yy + bias[None, :, None, None]

    h = silu(gn(x, params["gn0_gamma"], params["gn0_beta"], min(C // 4, 32)))
    h = conv3x3(h, params["conv0_w"], params["conv0_b"])
    h = h + (jnp.dot(silu(temb), params["dense_w"],
                     precision=lax.Precision.HIGHEST)
             + params["dense_b"])[:, :, None, None]
    h = silu(gn(h, params["gn1_gamma"], params["gn1_beta"], min(out_ch // 4, 32)))
    h = conv3x3(h, params["conv1_w"], params["conv1_b"])
    ref = x + h

    assert y.shape == (B, out_ch, H, W)
    max_err = float(jnp.max(jnp.abs(y - ref)))
    assert jnp.allclose(y, ref, atol=2e-3, rtol=2e-3), max_err
    print("KERNEL_OK")
</pallas_src>

<mosaic_0001>
module attributes {stable_mosaic.version = 11 : i64} {
  func.func @_stage0_temb_kernel(%arg0: i32, %arg1: i32, %arg2: memref<1x16x16x4xf32, #tpu.memory_space<vmem>>, %arg3: memref<4x4xf32, #tpu.memory_space<vmem>>, %arg4: memref<1x4xf32, #tpu.memory_space<vmem>>, %arg5: memref<1x4xf32, #tpu.memory_space<vmem>>, %arg6: memref<3x12x4xf32, #tpu.memory_space<vmem>>, %arg7: memref<1x4xf32, #tpu.memory_space<vmem>>, %arg8: memref<1x1x4xf32, #tpu.memory_space<vmem>>, %arg9: memref<1x16x16x4xf32, #tpu.memory_space<vmem>>, %arg10: memref<18x18x4xf32, #tpu.memory_space<vmem>>) attributes {dimension_semantics = [#tpu.dimension_semantics<parallel>, #tpu.dimension_semantics<arbitrary>], iteration_bounds = array<i64: 2, 1>, scalar_prefetch = 0 : i64, scratch_operands = 1 : i64, tpu.core_type = #tpu.core_type<tc>, window_params = [{transform_indices = @transform_0, window_bounds = array<i64: 1, 16, 16, 4>}, {pipeline_mode = #tpu.pipeline_mode<synchronous>, transform_indices = @transform_1, window_bounds = array<i64: 4, 4>}, {pipeline_mode = #tpu.pipeline_mode<synchronous>, transform_indices = @transform_2, window_bounds = array<i64: 1, 4>}, {pipeline_mode = #tpu.pipeline_mode<synchronous>, transform_indices = @transform_3, window_bounds = array<i64: 1, 4>}, {transform_indices = @transform_4, window_bounds = array<i64: 3, 12, 4>}, {transform_indices = @transform_5, window_bounds = array<i64: 1, 4>}, {transform_indices = @transform_6, window_bounds = array<i64: 1, 1, 4>}, {transform_indices = @transform_7, window_bounds = array<i64: 1, 16, 16, 4>}]} {
    %c0_i32 = arith.constant 0 : i32
    %0 = arith.cmpi eq, %arg1, %c0_i32 : i32
    %1 = arith.extui %0 : i1 to i32
    %c0_i32_0 = arith.constant 0 : i32
    %2 = arith.cmpi ne, %1, %c0_i32_0 : i32
    scf.if %2 {
      %c0_21 = arith.constant 0 : index
      %c0_22 = arith.constant 0 : index
      %c0_23 = arith.constant 0 : index
      %c0_24 = arith.constant 0 : index
      %41 = vector.load %arg2[%c0_21, %c0_22, %c0_23, %c0_24] : memref<1x16x16x4xf32, #tpu.memory_space<vmem>>, vector<1x16x16x4xf32>
      %42 = vector.shape_cast %41 : vector<1x16x16x4xf32> to vector<16x16x4xf32>
      %cst_25 = arith.constant dense<0.000000e+00> : vector<4xf32>
      %43 = vector.multi_reduction <add>, %42, %cst_25 [0, 1] : vector<16x16x4xf32> to vector<4xf32>
      %44 = vector.shape_cast %43 : vector<4xf32> to vector<1x4xf32>
      %c0_26 = arith.constant 0 : index
      %c0_27 = arith.constant 0 : index
      %45 = vector.load %arg3[%c0_26, %c0_27] : memref<4x4xf32, #tpu.memory_space<vmem>>, vector<4x4xf32>
      %cst_28 = arith.constant dense<0.000000e+00> : vector<1x4xf32>
      %46 = tpu.matmul %44, %45, %cst_28 {dimension_numbers = #tpu.dot_dimension_numbers<[1], [0], [0], [1], [0, 0, 1, 1], [], []>} : vector<1x4xf32>, vector<4x4xf32>, vector<1x4xf32> -> vector<1x4xf32>
      %47 = vector.shape_cast %46 : vector<1x4xf32> to vector<1x1x4xf32>
      %48 = vector.broadcast %47 : vector<1x1x4xf32> to vector<16x16x4xf32>
      %49 = arith.subf %42, %48 : vector<16x16x4xf32>
      %50 = arith.mulf %49, %49 : vector<16x16x4xf32>
      %cst_29 = arith.constant dense<0.000000e+00> : vector<4xf32>
      %51 = vector.multi_reduction <add>, %50, %cst_29 [0, 1] : vector<16x16x4xf32> to vector<4xf32>
      %52 = vector.shape_cast %51 : vector<4xf32> to vector<1x4xf32>
      %c0_30 = arith.constant 0 : index
      %c0_31 = arith.constant 0 : index
      %53 = vector.load %arg3[%c0_30, %c0_31] : memref<4x4xf32, #tpu.memory_space<vmem>>, vector<4x4xf32>
      %cst_32 = arith.constant dense<0.000000e+00> : vector<1x4xf32>
      %54 = tpu.matmul %52, %53, %cst_32 {dimension_numbers = #tpu.dot_dimension_numbers<[1], [0], [0], [1], [0, 0, 1, 1], [], []>} : vector<1x4xf32>, vector<4x4xf32>, vector<1x4xf32> -> vector<1x4xf32>
      %cst_33 = arith.constant 9.99999997E-7 : f32
      %55 = vector.broadcast %cst_33 : f32 to vector<1x4xf32>
      %56 = arith.addf %54, %55 : vector<1x4xf32>
      %57 = math.rsqrt %56 : vector<1x4xf32>
      %c0_34 = arith.constant 0 : index
      %c0_35 = arith.constant 0 : index
      %58 = vector.load %arg4[%c0_34, %c0_35] : memref<1x4xf32, #tpu.memory_space<vmem>>, vector<1x4xf32>
      %59 = arith.mulf %57, %58 : vector<1x4xf32>
      %60 = vector.shape_cast %59 : vector<1x4xf32> to vector<1x1x4xf32>
      %61 = vector.broadcast %60 : vector<1x1x4xf32> to vector<16x16x4xf32>
      %62 = arith.mulf %49, %61 : vector<16x16x4xf32>
      %c0_36 = arith.constant 0 : index
      %c0_37 = arith.constant 0 : index
      %63 = vector.load %arg5[%c0_36, %c0_37] : memref<1x4xf32, #tpu.memory_space<vmem>>, vector<1x4xf32>
      %64 = vector.shape_cast %63 : vector<1x4xf32> to vector<1x1x4xf32>
      %65 = vector.broadcast %64 : vector<1x1x4xf32> to vector<16x16x4xf32>
      %66 = arith.addf %62, %65 : vector<16x16x4xf32>
      %cst_38 = arith.constant 0.000000e+00 : f32
      %67 = vector.broadcast %cst_38 : f32 to vector<16x16x4xf32>
      %68 = arith.subf %67, %66 : vector<16x16x4xf32>
      %69 = math.exp %68 : vector<16x16x4xf32>
      %cst_39 = arith.constant 1.000000e+00 : f32
      %70 = vector.broadcast %cst_39 : f32 to vector<16x16x4xf32>
      %71 = arith.addf %70, %69 : vector<16x16x4xf32>
      %cst_40 = arith.constant 1.000000e+00 : f32
      %72 = vector.broadcast %cst_40 : f32 to vector<16x16x4xf32>
      %73 = arith.divf %72, %71 : vector<16x16x4xf32>
      %74 = arith.mulf %66, %73 : vector<16x16x4xf32>
      %cst_41 = arith.constant 0.000000e+00 : f32
      %75 = vector.broadcast %cst_41 : f32 to vector<18x18x4xf32>
      %c0_42 = arith.constant 0 : index
      %c0_43 = arith.constant 0 : index
      %c0_44 = arith.constant 0 : index
      %76 = vector.load %arg10[%c0_42, %c0_43, %c0_44] : memref<18x18x4xf32, #tpu.memory_space<vmem>>, vector<18x18x4xf32>
      tpu.vector_store %arg10[%c0_42, %c0_43, %c0_44], %75 {strides = array<i32>} : memref<18x18x4xf32, #tpu.memory_space<vmem>>, vector<18x18x4xf32>,
      %c1_45 = arith.constant 1 : index
      %c1_46 = arith.constant 1 : index
      %c0_47 = arith.constant 0 : index
      %77 = vector.load %arg10[%c1_45, %c1_46, %c0_47] : memref<18x18x4xf32, #tpu.memory_space<vmem>>, vector<16x16x4xf32>
      tpu.vector_store %arg10[%c1_45, %c1_46, %c0_47], %74 {strides = array<i32>} : memref<18x18x4xf32, #tpu.memory_space<vmem>>, vector<16x16x4xf32>,
    } else {
    }
    %c0 = arith.constant 0 : index
    %c0_1 = arith.constant 0 : index
    %c0_2 = arith.constant 0 : index
    %3 = vector.load %arg10[%c0, %c0_1, %c0_2] : memref<18x18x4xf32, #tpu.memory_space<vmem>>, vector<18x18x4xf32>
    %c0_3 = arith.constant 0 : index
    %c0_4 = arith.constant 0 : index
    %4 = vector.load %arg7[%c0_3, %c0_4] : memref<1x4xf32, #tpu.memory_space<vmem>>, vector<1x4xf32>
    %5 = vector.extract_strided_slice %3 {offsets = [0, 0, 0], sizes = [16, 16, 4], strides = [1, 1, 1]} : vector<18x18x4xf32> to vector<16x16x4xf32>
    %6 = vector.extract_strided_slice %3 {offsets = [1, 0, 0], sizes = [16, 16, 4], strides = [1, 1, 1]} : vector<18x18x4xf32> to vector<16x16x4xf32>
    %7 = vector.extract_strided_slice %3 {offsets = [2, 0, 0], sizes = [16, 16, 4], strides = [1, 1, 1]} : vector<18x18x4xf32> to vector<16x16x4xf32>
    %8 = tpu.concatenate %5, %6, %7 in 2 : vector<16x16x4xf32>, vector<16x16x4xf32>, vector<16x16x4xf32> -> vector<16x16x12xf32>
    %9 = vector.shape_cast %8 : vector<16x16x12xf32> to vector<256x12xf32>
    %c0_5 = arith.constant 0 : index
    %c0_6 = arith.constant 0 : index
    %c0_7 = arith.constant 0 : index
    %10 = vector.load %arg6[%c0_5, %c0_6, %c0_7] : memref<3x12x4xf32, #tpu.memory_space<vmem>>, vector<1x12x4xf32>
    %11 = vector.shape_cast %10 : vector<1x12x4xf32> to vector<12x4xf32>
    %cst = arith.constant dense<0.000000e+00> : vector<256x4xf32>
    %12 = tpu.matmul %9, %11, %cst {dimension_numbers = #tpu.dot_dimension_numbers<[1], [0], [0], [1], [0, 0, 1, 1], [], []>} : vector<256x12xf32>, vector<12x4xf32>, vector<256x4xf32> -> vector<256x4xf32>
    %13 = vector.broadcast %4 : vector<1x4xf32> to vector<256x4xf32>
    %14 = arith.addf %13, %12 : vector<256x4xf32>
    %15 = vector.extract_strided_slice %3 {offsets = [0, 1, 0], sizes = [16, 16, 4], strides = [1, 1, 1]} : vector<18x18x4xf32> to vector<16x16x4xf32>
    %16 = vector.extract_strided_slice %3 {offsets = [1, 1, 0], sizes = [16, 16, 4], strides = [1, 1, 1]} : vector<18x18x4xf32> to vector<16x16x4xf32>
    %17 = vector.extract_strided_slice %3 {offsets = [2, 1, 0], sizes = [16, 16, 4], strides = [1, 1, 1]} : vector<18x18x4xf32> to vector<16x16x4xf32>
    %18 = tpu.concatenate %15, %16, %17 in 2 : vector<16x16x4xf32>, vector<16x16x4xf32>, vector<16x16x4xf32> -> vector<16x16x12xf32>
    %19 = vector.shape_cast %18 : vector<16x16x12xf32> to vector<256x12xf32>
    %c1 = arith.constant 1 : index
    %c0_8 = arith.constant 0 : index
    %c0_9 = arith.constant 0 : index
    %20 = vector.load %arg6[%c1, %c0_8, %c0_9] : memref<3x12x4xf32, #tpu.memory_space<vmem>>, vector<1x12x4xf32>
    %21 = vector.shape_cast %20 : vector<1x12x4xf32> to vector<12x4xf32>
    %cst_10 = arith.constant dense<0.000000e+00> : vector<256x4xf32>
    %22 = tpu.matmul %19, %21, %cst_10 {dimension_numbers = #tpu.dot_dimension_numbers<[1], [0], [0], [1], [0, 0, 1, 1], [], []>} : vector<256x12xf32>, vector<12x4xf32>, vector<256x4xf32> -> vector<256x4xf32>
    %23 = arith.addf %14, %22 : vector<256x4xf32>
    %24 = vector.extract_strided_slice %3 {offsets = [0, 2, 0], sizes = [16, 16, 4], strides = [1, 1, 1]} : vector<18x18x4xf32> to vector<16x16x4xf32>
    %25 = vector.extract_strided_slice %3 {offsets = [1, 2, 0], sizes = [16, 16, 4], strides = [1, 1, 1]} : vector<18x18x4xf32> to vector<16x16x4xf32>
    %26 = vector.extract_strided_slice %3 {offsets = [2, 2, 0], sizes = [16, 16, 4], strides = [1, 1, 1]} : vector<18x18x4xf32> to vector<16x16x4xf32>
    %27 = tpu.concatenate %24, %25, %26 in 2 : vector<16x16x4xf32>, vector<16x16x4xf32>, vector<16x16x4xf32> -> vector<16x16x12xf32>
    %28 = vector.shape_cast %27 : vector<16x16x12xf32> to vector<256x12xf32>
    %c2 = arith.constant 2 : index
    %c0_11 = arith.constant 0 : index
    %c0_12 = arith.constant 0 : index
    %29 = vector.load %arg6[%c2, %c0_11, %c0_12] : memref<3x12x4xf32, #tpu.memory_space<vmem>>, vector<1x12x4xf32>
    %30 = vector.shape_cast %29 : vector<1x12x4xf32> to vector<12x4xf32>
    %cst_13 = arith.constant dense<0.000000e+00> : vector<256x4xf32>
    %31 = tpu.matmul %28, %30, %cst_13 {dimension_numbers = #tpu.dot_dimension_numbers<[1], [0], [0], [1], [0, 0, 1, 1], [], []>} : vector<256x12xf32>, vector<12x4xf32>, vector<256x4xf32> -> vector<256x4xf32>
    %32 = arith.addf %23, %31 : vector<256x4xf32>
    %c0_14 = arith.constant 0 : index
    %c0_15 = arith.constant 0 : index
    %c0_16 = arith.constant 0 : index
    %33 = vector.load %arg8[%c0_14, %c0_15, %c0_16] : memref<1x1x4xf32, #tpu.memory_space<vmem>>, vector<1x1x4xf32>
    %34 = vector.shape_cast %33 : vector<1x1x4xf32> to vector<1x4xf32>
    %35 = vector.broadcast %34 : vector<1x4xf32> to vector<256x4xf32>
    %36 = arith.addf %32, %35 : vector<256x4xf32>
    %37 = vector.shape_cast %36 : vector<256x4xf32> to vector<16x16x4xf32>
    %c0_17 = arith.constant 0 : index
    %c0_18 = arith.constant 0 : index
    %c0_19 = arith.constant 0 : index
    %c0_20 = arith.constant 0 : index
    %38 = vector.load %arg9[%c0_17, %c0_18, %c0_19, %c0_20] : memref<1x16x16x4xf32, #tpu.memory_space<vmem>>, vector<1x16x16x4xf32>
    %39 = vector.shape_cast %38 : vector<1x16x16x4xf32> to vector<16x16x4xf32>
    %40 = vector.shape_cast %37 : vector<16x16x4xf32> to vector<1x16x16x4xf32>
    tpu.vector_store %arg9[%c0_17, %c0_18, %c0_19, %c0_20], %40 {strides = array<i32>} : memref<1x16x16x4xf32, #tpu.memory_space<vmem>>, vector<1x16x16x4xf32>,
    return
  }
  func.func @transform_0(%arg0: i32, %arg1: i32) -> (i32, i32, i32, i32) {
    %c0_i32 = arith.constant 0 : i32
    %c0_i32_0 = arith.constant 0 : i32
    %c0_i32_1 = arith.constant 0 : i32
    %c0_i32_2 = arith.constant 0 : i32
    return %arg0, %c0_i32, %c0_i32_0, %c0_i32_1 : i32, i32, i32, i32
  }
  func.func @transform_1(%arg0: i32, %arg1: i32) -> (i32, i32) {
    %c0_i32 = arith.constant 0 : i32
    %c0_i32_0 = arith.constant 0 : i32
    %c0_i32_1 = arith.constant 0 : i32
    return %c0_i32, %c0_i32_0 : i32, i32
  }
  func.func @transform_2(%arg0: i32, %arg1: i32) -> (i32, i32) {
    %c0_i32 = arith.constant 0 : i32
    %c0_i32_0 = arith.constant 0 : i32
    %c0_i32_1 = arith.constant 0 : i32
    return %c0_i32, %c0_i32_0 : i32, i32
  }
  func.func @transform_3(%arg0: i32, %arg1: i32) -> (i32, i32) {
    %c0_i32 = arith.constant 0 : i32
    %c0_i32_0 = arith.constant 0 : i32
    %c0_i32_1 = arith.constant 0 : i32
    return %c0_i32, %c0_i32_0 : i32, i32
  }
  func.func @transform_4(%arg0: i32, %arg1: i32) -> (i32, i32, i32) {
    %c0_i32 = arith.constant 0 : i32
    %c0_i32_0 = arith.constant 0 : i32
    %c0_i32_1 = arith.constant 0 : i32
    return %c0_i32, %c0_i32_0, %arg1 : i32, i32, i32
  }
  func.func @transform_5(%arg0: i32, %arg1: i32) -> (i32, i32) {
    %c0_i32 = arith.constant 0 : i32
    %c0_i32_0 = arith.constant 0 : i32
    return %c0_i32, %arg1 : i32, i32
  }
  func.func @transform_6(%arg0: i32, %arg1: i32) -> (i32, i32, i32) {
    %c0_i32 = arith.constant 0 : i32
    %c0_i32_0 = arith.constant 0 : i32
    return %arg0, %c0_i32, %arg1 : i32, i32, i32
  }
  func.func @transform_7(%arg0: i32, %arg1: i32) -> (i32, i32, i32, i32) {
    %c0_i32 = arith.constant 0 : i32
    %c0_i32_0 = arith.constant 0 : i32
    %c0_i32_1 = arith.constant 0 : i32
    return %arg0, %c0_i32, %c0_i32_0, %arg1 : i32, i32, i32, i32
  }
}

</mosaic_0001>

<llo_original>
// kernel: tpu_custom_call.1
$region0: #{tpu_custom_call.1}
  #allocation0 [shape = 'u32[]', space=smem, size = 0x4, offset = 0x4, fixed_abs, tag = 'smem constant byte address 0x4 - core index']
  #allocation1 [shape = 'u32[144,128]{1,0:T(1,128)}', space=vmem, size = 0x12000, scoped, tag = 'internal scratch']
  #allocation2 [shape = 'f32[18,18,4]{2,1,0:T(8,128)}', space=vmem, size = 0x36000, scoped, tag = 'scratch operand']
  %s0 = inlined_call_operand.vmem [shape: f32[2,16,16,4], index: 0, kind: input, shape index: {}]
  %s1 = inlined_call_operand.vmem [shape: f32[4,4], index: 1, kind: input, shape index: {}]
  %s2 = inlined_call_operand.vmem [shape: f32[1,4], index: 2, kind: input, shape index: {}]
  %s3 = inlined_call_operand.vmem [shape: f32[1,4], index: 3, kind: input, shape index: {}]
  %s4 = inlined_call_operand.vmem [shape: f32[3,12,4], index: 4, kind: input, shape index: {}]
  %s5 = inlined_call_operand.vmem [shape: f32[1,4], index: 5, kind: input, shape index: {}]
  %s6 = inlined_call_operand.vmem [shape: f32[2,1,4], index: 6, kind: input, shape index: {}]
  %s7 = inlined_call_operand.vmem [shape: f32[2,16,16,4], index: 7, kind: output, shape index: {}]
  %s8 = sld [smem:[#allocation0]]
  $region65: #{tpu_custom_call.1} parent=0
    _
  %s10 = ssub.s32 1, %s8
  %s11 = scalar_select 0, %s10, %s8
  loop: start=0, step=1, limit=4
  $region2: #{tpu_custom_call.1} parent=0 // loop_pre_header
    _
  $region3: #{tpu_custom_call.1} parent=0 // loop_header
    %s13 = sphi 0, %s17
    %p14 = scmp.ge.s32.totalorder %s13, 4
    %s20 = sphi 0, %s32
    %s21 = sphi 0, %s28
    %s22 = sphi 0, %s20
    %s23 = sphi 0, %s21
    %s24 = sphi 0, %s22
    %s25 = sphi 0, %s23
    %s35 = sphi 0, %s37
    %s38 = sphi 0, %s35
    %s39 = sphi 0, %s38
    %s55 = sphi 0, %s39
    %s59 = sphi 0, %s59
    %s61 = sphi 0, %s59
    %s62 = sphi 0, %s61
    %s76 = sphi 0, %s62
    %s80 = sphi 0, %s80
    %s82 = sphi 0, %s80
    %s83 = sphi 0, %s82
    %s97 = sphi 0, %s83
    %s101 = sphi 0, %s101
    %s103 = sphi 0, %s101
    %s104 = sphi 0, %s103
    %s118 = sphi 0, %s104
    %s124 = sphi 0, %s126
    %s127 = sphi 0, %s124
    %s128 = sphi 0, %s127
    %s144 = sphi 0, %s128
    %s150 = sphi 0, %s152
    %s153 = sphi 0, %s150
    %s154 = sphi 0, %s153
    %s170 = sphi 0, %s154
    %s178 = sphi 0, %s180
    %s181 = sphi 0, %s178
    %s182 = sphi 0, %s181
    %s198 = sphi 0, %s182
    %s206 = sphi 0, %s208
    %s209 = sphi 0, %s206
    %s210 = sphi 0, %s209
    %s226 = sphi 0, %s210
  $region4: #{tpu_custom_call.1} parent=0 // loop_header_branch
    %16 = sbr.rel (%p14) target = $region8
  $region5: #{tpu_custom_call.1} parent=0 // loop_body
    %s18 = ssub.s32 %s13, 1
    %s19 = ssub.s32 %s13, 2
    %s26 = sadd.s32 1, %s21
    %p27 = scmp.ge.s32.totalorder %s26, 1
    %s28 = scalar_select %p27, 0, %s26
    %s29 = sadd.s32 1, %s20
    %s30 = scalar_select %p27, %s29, %s20
    %p31 = scmp.ge.s32.totalorder %s30, 2
    %s32 = scalar_select %p31, 0, %s30
    %s33 = ssub.s32 %s20, %s32
    %p34 = scmp.eq.s32.totalorder %s33, 0
    %s36 = sadd.s32 %s35, 1
    %s37 = scalar_select %p34, %s35, %s36
    %p40 = pneg %p34
    %p41 = scmp.eq.s32.totalorder %s13, 1
    %p42 = por %p40, %p41
    %p43 = scmp.ne.s32.totalorder %s35, %s38
    %p44 = scmp.eq.s32.totalorder %s13, 0
    %p45 = por %p43, %p44
    %p46 = scmp.ne.s32.totalorder %s35, %s38
    %p47 = scmp.eq.s32.totalorder %s18, 1
    %p48 = por %p46, %p47
    %p49 = scmp.ne.s32.totalorder %s38, %s39
    %p50 = scmp.eq.s32.totalorder %s18, 0
    %p51 = por %p49, %p50
    %p52 = scmp.ne.s32.totalorder %s38, %s39
    %p53 = scmp.eq.s32.totalorder %s19, 1
    %p54 = por %p52, %p53
    %p56 = scmp.ne.s32.totalorder %s39, %s55
    %p57 = scmp.eq.s32.totalorder %s19, 0
    %p58 = por %p56, %p57
    %s60 = sadd.s32 %s59, 1
    %p63 = scmp.eq.s32.totalorder %s13, 1
    %p64 = scmp.ne.s32.totalorder %s59, %s61
    %p65 = scmp.eq.s32.totalorder %s13, 0
    %p66 = por %p64, %p65
    %p67 = scmp.ne.s32.totalorder %s59, %s61
    %p68 = scmp.eq.s32.totalorder %s18, 1
    %p69 = por %p67, %p68
    %p70 = scmp.ne.s32.totalorder %s61, %s62
    %p71 = scmp.eq.s32.totalorder %s18, 0
    %p72 = por %p70, %p71
    %p73 = scmp.ne.s32.totalorder %s61, %s62
    %p74 = scmp.eq.s32.totalorder %s19, 1
    %p75 = por %p73, %p74
    %p77 = scmp.ne.s32.totalorder %s62, %s76
    %p78 = scmp.eq.s32.totalorder %s19, 0
    %p79 = por %p77, %p78
    %s81 = sadd.s32 %s80, 1
    %p84 = scmp.eq.s32.totalorder %s13, 1
    %p85 = scmp.ne.s32.totalorder %s80, %s82
    %p86 = scmp.eq.s32.totalorder %s13, 0
    %p87 = por %p85, %p86
    %p88 = scmp.ne.s32.totalorder %s80, %s82
    %p89 = scmp.eq.s32.totalorder %s18, 1
    %p90 = por %p88, %p89
    %p91 = scmp.ne.s32.totalorder %s82, %s83
    %p92 = scmp.eq.s32.totalorder %s18, 0
    %p93 = por %p91, %p92
    %p94 = scmp.ne.s32.totalorder %s82, %s83
    %p95 = scmp.eq.s32.totalorder %s19, 1
    %p96 = por %p94, %p95
    %p98 = scmp.ne.s32.totalorder %s83, %s97
    %p99 = scmp.eq.s32.totalorder %s19, 0
    %p100 = por %p98, %p99
    %s102 = sadd.s32 %s101, 1
    %p105 = scmp.eq.s32.totalorder %s13, 1
    %p106 = scmp.ne.s32.totalorder %s101, %s103
    %p107 = scmp.eq.s32.totalorder %s13, 0
    %p108 = por %p106, %p107
    %p109 = scmp.ne.s32.totalorder %s101, %s103
    %p110 = scmp.eq.s32.totalorder %s18, 1
    %p111 = por %p109, %p110
    %p112 = scmp.ne.s32.totalorder %s103, %s104
    %p113 = scmp.eq.s32.totalorder %s18, 0
    %p114 = por %p112, %p113
    %p115 = scmp.ne.s32.totalorder %s103, %s104
    %p116 = scmp.eq.s32.totalorder %s19, 1
    %p117 = por %p115, %p116
    %p119 = scmp.ne.s32.totalorder %s104, %s118
    %p120 = scmp.eq.s32.totalorder %s19, 0
    %p121 = por %p119, %p120
    %s122 = ssub.s32 %s21, %s28
    %p123 = scmp.eq.s32.totalorder %s122, 0
    %s125 = sadd.s32 %s124, 1
    %s126 = scalar_select %p123, %s124, %s125
    %p129 = pneg %p123
    %p130 = scmp.eq.s32.totalorder %s13, 1
    %p131 = por %p129, %p130
    %p132 = scmp.ne.s32.totalorder %s124, %s127
    %p133 = scmp.eq.s32.totalorder %s13, 0
    %p134 = por %p132, %p133
    %p135 = scmp.ne.s32.totalorder %s124, %s127
    %p136 = scmp.eq.s32.totalorder %s18, 1
    %p137 = por %p135, %p136
    %p138 = scmp.ne.s32.totalorder %s127, %s128
    %p139 = scmp.eq.s32.totalorder %s18, 0
    %p140 = por %p138, %p139
    %p141 = scmp.ne.s32.totalorder %s127, %s128
    %p142 = scmp.eq.s32.totalorder %s19, 1
    %p143 = por %p141, %p142
    %p145 = scmp.ne.s32.totalorder %s128, %s144
    %p146 = scmp.eq.s32.totalorder %s19, 0
    %p147 = por %p145, %p146
    %s148 = ssub.s32 %s21, %s28
    %p149 = scmp.eq.s32.totalorder %s148, 0
    %s151 = sadd.s32 %s150, 1
    %s152 = scalar_select %p149, %s150, %s151
    %p155 = pneg %p149
    %p156 = scmp.eq.s32.totalorder %s13, 1
    %p157 = por %p155, %p156
    %p158 = scmp.ne.s32.totalorder %s150, %s153
    %p159 = scmp.eq.s32.totalorder %s13, 0
    %p160 = por %p158, %p159
    %p161 = scmp.ne.s32.totalorder %s150, %s153
    %p162 = scmp.eq.s32.totalorder %s18, 1
    %p163 = por %p161, %p162
    %p164 = scmp.ne.s32.totalorder %s153, %s154
    %p165 = scmp.eq.s32.totalorder %s18, 0
    %p166 = por %p164, %p165
    %p167 = scmp.ne.s32.totalorder %s153, %s154
    %p168 = scmp.eq.s32.totalorder %s19, 1
    %p169 = por %p167, %p168
    %p171 = scmp.ne.s32.totalorder %s154, %s170
    %p172 = scmp.eq.s32.totalorder %s19, 0
    %p173 = por %p171, %p172
    %s174 = ssub.s32 %s20, %s32
    %s175 = ssub.s32 %s21, %s28
    %s176 = sor.u32 %s174, %s175
    %p177 = scmp.eq.s32.totalorder %s176, 0
    %s179 = sadd.s32 %s178, 1
    %s180 = scalar_select %p177, %s178, %s179
    %p183 = pneg %p177
    %p184 = scmp.eq.s32.totalorder %s13, 1
    %p185 = por %p183, %p184
    %p186 = scmp.ne.s32.totalorder %s178, %s181
    %p187 = scmp.eq.s32.totalorder %s13, 0
    %p188 = por %p186, %p187
    %p189 = scmp.ne.s32.totalorder %s178, %s181
    %p190 = scmp.eq.s32.totalorder %s18, 1
    %p191 = por %p189, %p190
    %p192 = scmp.ne.s32.totalorder %s181, %s182
    %p193 = scmp.eq.s32.totalorder %s18, 0
    %p194 = por %p192, %p193
    %p195 = scmp.ne.s32.totalorder %s181, %s182
    %p196 = scmp.eq.s32.totalorder %s19, 1
    %p197 = por %p195, %p196
    %p199 = scmp.ne.s32.totalorder %s182, %s198
    %p200 = scmp.eq.s32.totalorder %s19, 0
    %p201 = por %p199, %p200
    %s202 = ssub.s32 %s20, %s32
    %s203 = ssub.s32 %s21, %s28
    %s204 = sor.u32 %s202, %s203
    %p205 = scmp.eq.s32.totalorder %s204, 0
    %s207 = sadd.s32 %s206, 1
    %s208 = scalar_select %p205, %s206, %s207
    %p211 = pneg %p205
    %p212 = scmp.eq.s32.totalorder %s13, 1
    %p213 = por %p211, %p212
    %p214 = scmp.ne.s32.totalorder %s206, %s209
    %p215 = scmp.eq.s32.totalorder %s13, 0
    %p216 = por %p214, %p215
    %p217 = scmp.ne.s32.totalorder %s206, %s209
    %p218 = scmp.eq.s32.totalorder %s18, 1
    %p219 = por %p217, %p218
    %p220 = scmp.ne.s32.totalorder %s209, %s210
    %p221 = scmp.eq.s32.totalorder %s18, 0
    %p222 = por %p220, %p221
    %p223 = scmp.ne.s32.totalorder %s209, %s210
    %p224 = scmp.eq.s32.totalorder %s19, 1
    %p225 = por %p223, %p224
    %p227 = scmp.ne.s32.totalorder %s210, %s226
    %p228 = scmp.eq.s32.totalorder %s19, 0
    %p229 = por %p227, %p228
    %p230 = scmp.le.s32.totalorder 1, %s13
    %p231 = scmp.lt.s32.totalorder %s13, 3
    %p232 = pnand %p230, %p231
    %p233 = pneg %p232
    // Predicated region
    $region9: #{tpu_custom_call.1} parent=5 // pred_check
      _
    $region10: #{tpu_custom_call.1} parent=5 // pred_check_branch
      %235 = sbr.rel (%p232) target = $region12
    $region11: #{tpu_custom_call.1} parent=5 // pred_region
      %s236 = ssub.s32 %s13, 1
      // Predicated region
      $region13: #{tpu_custom_call.1} parent=11 // pred_check
        %p237 = pneg %p72
      $region14: #{tpu_custom_call.1} parent=11 // pred_check_branch
        %239 = sbr.rel (%p237) target = $region16
      $region15: #{tpu_custom_call.1} parent=11 // pred_region
        _
      $region16: #{tpu_custom_call.1} parent=11 // pred_fallthru
        _
      // Predicated region
      $region17: #{tpu_custom_call.1} parent=11 // pred_check
        %p240 = pneg %p93
      $region18: #{tpu_custom_call.1} parent=11 // pred_check_branch
        %242 = sbr.rel (%p240) target = $region20
      $region19: #{tpu_custom_call.1} parent=11 // pred_region
        _
      $region20: #{tpu_custom_call.1} parent=11 // pred_fallthru
        _
      // Predicated region
      $region21: #{tpu_custom_call.1} parent=11 // pred_check
        %p243 = pneg %p114
      $region22: #{tpu_custom_call.1} parent=11 // pred_check_branch
        %245 = sbr.rel (%p243) target = $region24
      $region23: #{tpu_custom_call.1} parent=11 // pred_region
        _
      $region24: #{tpu_custom_call.1} parent=11 // pred_fallthru
        _
      // Predicated region
      $region25: #{tpu_custom_call.1} parent=11 // pred_check
        %p246 = pneg %p140
      $region26: #{tpu_custom_call.1} parent=11 // pred_check_branch
        %248 = sbr.rel (%p246) target = $region28
      $region27: #{tpu_custom_call.1} parent=11 // pred_region
        %p249 = scmp.lt.s32.totalorder %s23, 0
        %s250 = scalar_select %p249, %s23, 0
        %s251 = smul.addr %s250, 8
        %s252 = scalar_lea.vmem %s4, %s251
      $region28: #{tpu_custom_call.1} parent=11 // pred_fallthru
        _
      // Predicated region
      $region29: #{tpu_custom_call.1} parent=11 // pred_check
        %p253 = pneg %p166
      $region30: #{tpu_custom_call.1} parent=11 // pred_check_branch
        %255 = sbr.rel (%p253) target = $region32
      $region31: #{tpu_custom_call.1} parent=11 // pred_region
        %p256 = scmp.lt.s32.totalorder %s23, 0
        %s257 = scalar_select %p256, %s23, 0
        %s258 = scalar_lea.vmem %s5, %s257
      $region32: #{tpu_custom_call.1} parent=11 // pred_fallthru
        _
    $region12: #{tpu_custom_call.1} parent=5 // pred_fallthru
      _
    %p259 = scmp.lt.s32.totalorder %s13, 2
    // Predicated region
    $region33: #{tpu_custom_call.1} parent=5 // pred_check
      %p260 = pneg %p259
    $region34: #{tpu_custom_call.1} parent=5 // pred_check_branch
      %262 = sbr.rel (%p260) target = $region36
    $region35: #{tpu_custom_call.1} parent=5 // pred_region
      // Predicated region
      $region37: #{tpu_custom_call.1} parent=35 // pred_check
        %p263 = pneg %p45
      $region38: #{tpu_custom_call.1} parent=35 // pred_check_branch
        %265 = sbr.rel (%p263) target = $region40
      $region39: #{tpu_custom_call.1} parent=35 // pred_region
        %p266 = scmp.lt.s32.totalorder %s20, 1
        %s267 = scalar_select %p266, %s20, 1
        %s268 = smul.addr %s267, 32
        %s269 = smul.addr %s268, 8
        %s270 = scalar_lea.vmem %s0, %s269
      $region40: #{tpu_custom_call.1} parent=35 // pred_fallthru
        _
      // Predicated region
      $region41: #{tpu_custom_call.1} parent=35 // pred_check
        %p271 = pneg %p188
      $region42: #{tpu_custom_call.1} parent=35 // pred_check_branch
        %273 = sbr.rel (%p271) target = $region44
      $region43: #{tpu_custom_call.1} parent=35 // pred_region
        %p274 = scmp.lt.s32.totalorder %s20, 1
        %s275 = scalar_select %p274, %s20, 1
        %p276 = scmp.lt.s32.totalorder %s21, 0
        %s277 = scalar_select %p276, %s21, 0
        %s278 = sadd.s32 %s277, %s275
        %s279 = scalar_lea.vmem %s6, %s278
      $region44: #{tpu_custom_call.1} parent=35 // pred_fallthru
        _
    $region36: #{tpu_custom_call.1} parent=5 // pred_fallthru
      _
    %p280 = scmp.le.s32.totalorder 1, %s13
    %p281 = scmp.lt.s32.totalorder %s13, 3
    %p282 = pnand %p280, %p281
    %p283 = pneg %p282
    // Predicated region
    $region45: #{tpu_custom_call.1} parent=5 // pred_check
      _
    $region46: #{tpu_custom_call.1} parent=5 // pred_check_branch
      %285 = sbr.rel (%p282) target = $region48
    $region47: #{tpu_custom_call.1} parent=5 // pred_region
      %s286 = ssub.s32 %s13, 1
      %p287 = scmp.lt.s32.totalorder %s22, 1
      %s288 = scalar_select %p287, %s22, 1
      %s289 = smul.addr %s288, 32
      %s290 = smul.addr %s289, 8
      %s291 = scalar_lea.vmem %s0, %s290
      %p292 = pneg %p51
      %p293 = pneg %p48
      %p294 = pneg %p72
      %p295 = pneg %p69
      %p296 = pneg %p93
      %p297 = pneg %p90
      %p298 = pneg %p114
      %p299 = pneg %p111
      %p300 = scmp.lt.s32.totalorder %s23, 0
      %s301 = scalar_select %p300, %s23, 0
      %s302 = smul.addr %s301, 8
      %s303 = scalar_lea.vmem %s4, %s302
      %p304 = pneg %p140
      %p305 = pneg %p137
      %p306 = scmp.lt.s32.totalorder %s23, 0
      %s307 = scalar_select %p306, %s23, 0
      %s308 = scalar_lea.vmem %s5, %s307
      %p309 = pneg %p166
      %p310 = pneg %p163
      %p311 = scmp.lt.s32.totalorder %s22, 1
      %s312 = scalar_select %p311, %s22, 1
      %p313 = scmp.lt.s32.totalorder %s23, 0
      %s314 = scalar_select %p313, %s23, 0
      %s315 = sadd.s32 %s314, %s312
      %s316 = scalar_lea.vmem %s6, %s315
      %p317 = pneg %p194
      %p318 = pneg %p191
      %p319 = pneg %p222
      %p320 = pneg %p219
      %p321 = scmp.lt.s32.totalorder %s22, 1
      %s322 = scalar_select %p321, %s22, 1
      %p323 = scmp.lt.s32.totalorder %s23, 0
      %s324 = scalar_select %p323, %s23, 0
      %s325 = smul.addr %s322, 32
      %s326 = sadd.s32 %s324, %s325
      %s327 = smul.addr %s326, 8
      %s328 = scalar_lea.vmem %s7, %s327
      %p329 = scmp.lt.s32.totalorder %s22, 1
      %s330 = scalar_select %p329, %s22, 1
      %s331 = smul.addr %s330, 32
      %s332 = smul.addr %s331, 8
      %s333 = scalar_lea.vmem %s0, %s332
      %p334 = scmp.lt.s32.totalorder %s23, 0
      %s335 = scalar_select %p334, %s23, 0
      %s336 = smul.addr %s335, 8
      %s337 = scalar_lea.vmem %s4, %s336
      %p338 = scmp.lt.s32.totalorder %s23, 0
      %s339 = scalar_select %p338, %s23, 0
      %s340 = scalar_lea.vmem %s5, %s339
      %p341 = scmp.lt.s32.totalorder %s22, 1
      %s342 = scalar_select %p341, %s22, 1
      %p343 = scmp.lt.s32.totalorder %s23, 0
      %s344 = scalar_select %p343, %s23, 0
      %s345 = sadd.s32 %s344, %s342
      %s346 = scalar_lea.vmem %s6, %s345
      %p347 = scmp.lt.s32.totalorder %s22, 1
      %s348 = scalar_select %p347, %s22, 1
      %p349 = scmp.lt.s32.totalorder %s23, 0
      %s350 = scalar_select %p349, %s23, 0
      %s351 = smul.addr %s348, 32
      %s352 = sadd.s32 %s350, %s351
      %s353 = smul.addr %s352, 8
      %s354 = scalar_lea.vmem %s7, %s353
      %p355 = scmp.eq.s32.totalorder %s23, 0
      // Predicated region
      $region49: #{tpu_custom_call.1} parent=47 // pred_check
        %p356 = pneg %p355
      $region50: #{tpu_custom_call.1} parent=47 // pred_check_branch
        %358 = sbr.rel (%p356) target = $region52
      $region51: #{tpu_custom_call.1} parent=47 // pred_region
        %v359 = vld [vmem:[%s333] sm:$0xff]
        %v360 = vld [vmem:[%s333 + $0x8] sm:$0xff]
        %v361 = vld [vmem:[%s333 + $0x10] sm:$0xff]
        %v362 = vld [vmem:[%s333 + $0x18] sm:$0xff]
        %v363 = vld [vmem:[%s333 + $0x20] sm:$0xff]
        %v364 = vld [vmem:[%s333 + $0x28] sm:$0xff]
        %v365 = vld [vmem:[%s333 + $0x30] sm:$0xff]
        %v366 = vld [vmem:[%s333 + $0x38] sm:$0xff]
        %v367 = vld [vmem:[%s333 + $0x40] sm:$0xff]
        %v368 = vld [vmem:[%s333 + $0x48] sm:$0xff]
        %v369 = vld [vmem:[%s333 + $0x50] sm:$0xff]
        %v370 = vld [vmem:[%s333 + $0x58] sm:$0xff]
        %v371 = vld [vmem:[%s333 + $0x60] sm:$0xff]
        %v372 = vld [vmem:[%s333 + $0x68] sm:$0xff]
        %v373 = vld [vmem:[%s333 + $0x70] sm:$0xff]
        %v374 = vld [vmem:[%s333 + $0x78] sm:$0xff]
        %v375 = vld [vmem:[%s333 + $0x80] sm:$0xff]
        %v376 = vld [vmem:[%s333 + $0x88] sm:$0xff]
        %v377 = vld [vmem:[%s333 + $0x90] sm:$0xff]
        %v378 = vld [vmem:[%s333 + $0x98] sm:$0xff]
        %v379 = vld [vmem:[%s333 + $0xa0] sm:$0xff]
        %v380 = vld [vmem:[%s333 + $0xa8] sm:$0xff]
        %v381 = vld [vmem:[%s333 + $0xb0] sm:$0xff]
        %v382 = vld [vmem:[%s333 + $0xb8] sm:$0xff]
        %v383 = vld [vmem:[%s333 + $0xc0] sm:$0xff]
        %v384 = vld [vmem:[%s333 + $0xc8] sm:$0xff]
        %v385 = vld [vmem:[%s333 + $0xd0] sm:$0xff]
        %v386 = vld [vmem:[%s333 + $0xd8] sm:$0xff]
        %v387 = vld [vmem:[%s333 + $0xe0] sm:$0xff]
        %v388 = vld [vmem:[%s333 + $0xe8] sm:$0xff]
        %v389 = vld [vmem:[%s333 + $0xf0] sm:$0xff]
        %v390 = vld [vmem:[%s333 + $0xf8] sm:$0xff]
        %vm391 = vcmask 31744
        %v392 = vsel %vm391, %v359, 0.0
        %v393 = vsel %vm391, %v360, 0.0
        %v394 = vadd.f32 %v392, %v393
        %v395 = vsel %vm391, %v361, 0.0
        %v396 = vadd.f32 %v394, %v395
        %v397 = vsel %vm391, %v362, 0.0
        %v398 = vadd.f32 %v396, %v397
        %v399 = vsel %vm391, %v363, 0.0
        %v400 = vadd.f32 %v398, %v399
        %v401 = vsel %vm391, %v364, 0.0
        %v402 = vadd.f32 %v400, %v401
        %v403 = vsel %vm391, %v365, 0.0
        %v404 = vadd.f32 %v402, %v403
        %v405 = vsel %vm391, %v366, 0.0
        %v406 = vadd.f32 %v404, %v405
        %v407 = vsel %vm391, %v367, 0.0
        %v408 = vadd.f32 %v406, %v407
        %v409 = vsel %vm391, %v368, 0.0
        %v410 = vadd.f32 %v408, %v409
        %v411 = vsel %vm391, %v369, 0.0
        %v412 = vadd.f32 %v410, %v411
        %v413 = vsel %vm391, %v370, 0.0
        %v414 = vadd.f32 %v412, %v413
        %v415 = vsel %vm391, %v371, 0.0
        %v416 = vadd.f32 %v414, %v415
        %v417 = vsel %vm391, %v372, 0.0
        %v418 = vadd.f32 %v416, %v417
        %v419 = vsel %vm391, %v373, 0.0
        %v420 = vadd.f32 %v418, %v419
        %v421 = vsel %vm391, %v374, 0.0
        %v422 = vadd.f32 %v420, %v421
        %v423 = vsel %vm391, %v375, 0.0
        %v424 = vadd.f32 %v422, %v423
        %v425 = vsel %vm391, %v376, 0.0
        %v426 = vadd.f32 %v424, %v425
        %v427 = vsel %vm391, %v377, 0.0
        %v428 = vadd.f32 %v426, %v427
        %v429 = vsel %vm391, %v378, 0.0
        %v430 = vadd.f32 %v428, %v429
        %v431 = vsel %vm391, %v379, 0.0
        %v432 = vadd.f32 %v430, %v431
        %v433 = vsel %vm391, %v380, 0.0
        %v434 = vadd.f32 %v432, %v433
        %v435 = vsel %vm391, %v381, 0.0
        %v436 = vadd.f32 %v434, %v435
        %v437 = vsel %vm391, %v382, 0.0
        %v438 = vadd.f32 %v436, %v437
        %v439 = vsel %vm391, %v383, 0.0
        %v440 = vadd.f32 %v438, %v439
        %v441 = vsel %vm391, %v384, 0.0
        %v442 = vadd.f32 %v440, %v441
        %v443 = vsel %vm391, %v385, 0.0
        %v444 = vadd.f32 %v442, %v443
        %v445 = vsel %vm391, %v386, 0.0
        %v446 = vadd.f32 %v444, %v445
        %v447 = vsel %vm391, %v387, 0.0
        %v448 = vadd.f32 %v446, %v447
        %v449 = vsel %vm391, %v388, 0.0
        %v450 = vadd.f32 %v448, %v449
        %v451 = vsel %vm391, %v389, 0.0
        %v452 = vadd.f32 %v450, %v451
        %v453 = vsel %vm391, %v390, 0.0
        %v454 = vadd.f32 %v452, %v453
        %v455 = vrot.slane %v454, 4
        %v456 = vadd.f32 %v454, %v455
        %v457 = vrot.slane %v456, 2
        %v458 = vadd.f32 %v456, %v457
        %v459 = vrot.slane %v458, 1
        %v460 = vadd.f32 %v458, %v459
        %v461 = vld [vmem:[%s1] sm:$0xf]
        %v463 = vsel %vm391, %v460, 0
        %vm465 = vcmask 1043456
        %v467 = vsel %vm465, %v461, 0
        %469 = vmatprep.subr.mxu0 0.0
        %470 = vmatpush1.msra.mxu0 %v467
        %471 = vmatprep.subr.mxu0 0.0
        %472 = vmatpush1.msra.mxu0 0.0
        %473 = vmatprep.subr.mxu0 0.0
        %474 = vmatpush1.msra.mxu0 0.0
        %475 = vmatprep.subr.mxu0 0.0
        %476 = vmatpush1.msra.mxu0 0.0
        %477 = vmatprep.subr.mxu0 0.0
        %478 = vmatpush1.msra.mxu0 0.0
        %479 = vmatprep.subr.mxu0 0.0
        %480 = vmatpush1.msra.mxu0 0.0
        %481 = vmatprep.subr.mxu0 0.0
        %482 = vmatpush1.msra.mxu0 0.0
        %483 = vmatprep.subr.mxu0 0.0
        %484 = vmatpush1.msra.mxu0 0.0
        %485 = vmatprep.subr.mxu0 0.0
        %486 = vmatpush1.msra.mxu0 0.0
        %487 = vmatprep.subr.mxu0 0.0
        %488 = vmatpush1.msra.mxu0 0.0
        %489 = vmatprep.subr.mxu0 0.0
        %490 = vmatpush1.msra.mxu0 0.0
        %491 = vmatprep.subr.mxu0 0.0
        %492 = vmatpush1.msra.mxu0 0.0
        %493 = vmatprep.subr.mxu0 0.0
        %494 = vmatpush1.msra.mxu0 0.0
        %495 = vmatprep.subr.mxu0 0.0
        %496 = vmatpush1.msra.mxu0 0.0
        %497 = vmatprep.subr.mxu0 0.0
        %498 = vmatpush1.msra.mxu0 0.0
        %499 = vmatprep.subr.mxu0 0.0
        %500 = vmatpush1.msra.mxu0 0.0
        %501 = vmatprep.subr.mxu0 0.0
        %502 = vmatpush1.msra.mxu0 0.0
        %503 = vmatprep.subr.mxu0 0.0
        %504 = vmatpush1.msra.mxu0 0.0
        %505 = vmatprep.subr.mxu0 0.0
        %506 = vmatpush1.msra.mxu0 0.0
        %507 = vmatprep.subr.mxu0 0.0
        %508 = vmatpush1.msra.mxu0 0.0
        %509 = vmatprep.subr.mxu0 0.0
        %510 = vmatpush1.msra.mxu0 0.0
        %511 = vmatprep.subr.mxu0 0.0
        %512 = vmatpush1.msra.mxu0 0.0
        %513 = vmatprep.subr.mxu0 0.0
        %514 = vmatpush1.msra.mxu0 0.0
        %515 = vmatprep.subr.mxu0 0.0
        %516 = vmatpush1.msra.mxu0 0.0
        %517 = vmatprep.subr.mxu0 0.0
        %518 = vmatpush1.msra.mxu0 0.0
        %519 = vmatprep.subr.mxu0 0.0
        %520 = vmatpush1.msra.mxu0 0.0
        %521 = vmatprep.subr.mxu0 0.0
        %522 = vmatpush1.msra.mxu0 0.0
        %523 = vmatprep.subr.mxu0 0.0
        %524 = vmatpush1.msra.mxu0 0.0
        %525 = vmatprep.subr.mxu0 0.0
        %526 = vmatpush1.msra.mxu0 0.0
        %527 = vmatprep.subr.mxu0 0.0
        %528 = vmatpush1.msra.mxu0 0.0
        %529 = vmatprep.subr.mxu0 0.0
        %530 = vmatpush1.msra.mxu0 0.0
        %531 = vmatprep.subr.mxu0 0.0
        %532 = vmatpush1.msra.mxu0 0.0
        %533 = vmatprep.mubr.f32.mxu0 0.0
        %534 = vmatmul.mubr.f32.gmra.mrb[0].mxu0 %v463
        %v535 = vpop.f32.mrb[0].mxu0
        %v536 = vadd.f32 0.0, %v535
        %v537 = vpop.f32.mrb[0].mxu0
        %538 = vdwg.mxu0
        %v539 = vlaneseq
        %v540 = vshrl.u32 %v539, 7
        %v541 = vsub.s32 0, %v540
        %v542 = vrot.slane %v536, %v541
        %v543 = vsub.f32 %v359, %v542
        %v544 = vsub.f32 %v360, %v542
        %v545 = vsub.f32 %v361, %v542
        %v546 = vsub.f32 %v362, %v542
        %v547 = vsub.f32 %v363, %v542
        %v548 = vsub.f32 %v364, %v542
        %v549 = vsub.f32 %v365, %v542
        %v550 = vsub.f32 %v366, %v542
        %v551 = vsub.f32 %v367, %v542
        %v552 = vsub.f32 %v368, %v542
        %v553 = vsub.f32 %v369, %v542
        %v554 = vsub.f32 %v370, %v542
        %v555 = vsub.f32 %v371, %v542
        %v556 = vsub.f32 %v372, %v542
        %v557 = vsub.f32 %v373, %v542
        %v558 = vsub.f32 %v374, %v542
        %v559 = vsub.f32 %v375, %v542
        %v560 = vsub.f32 %v376, %v542
        %v561 = vsub.f32 %v377, %v542
        %v562 = vsub.f32 %v378, %v542
        %v563 = vsub.f32 %v379, %v542
        %v564 = vsub.f32 %v380, %v542
        %v565 = vsub.f32 %v381, %v542
        %v566 = vsub.f32 %v382, %v542
        %v567 = vsub.f32 %v383, %v542
        %v568 = vsub.f32 %v384, %v542
        %v569 = vsub.f32 %v385, %v542
        %v570 = vsub.f32 %v386, %v542
        %v571 = vsub.f32 %v387, %v542
        %v572 = vsub.f32 %v388, %v542
        %v573 = vsub.f32 %v389, %v542
        %v574 = vsub.f32 %v390, %v542
        %v575 = vmul.f32 %v543, %v543
        %v576 = vmul.f32 %v544, %v544
        %v577 = vmul.f32 %v545, %v545
        %v578 = vmul.f32 %v546, %v546
        %v579 = vmul.f32 %v547, %v547
        %v580 = vmul.f32 %v548, %v548
        %v581 = vmul.f32 %v549, %v549
        %v582 = vmul.f32 %v550, %v550
        %v583 = vmul.f32 %v551, %v551
        %v584 = vmul.f32 %v552, %v552
        %v585 = vmul.f32 %v553, %v553
        %v586 = vmul.f32 %v554, %v554
        %v587 = vmul.f32 %v555, %v555
        %v588 = vmul.f32 %v556, %v556
        %v589 = vmul.f32 %v557, %v557
        %v590 = vmul.f32 %v558, %v558
        %v591 = vmul.f32 %v559, %v559
        %v592 = vmul.f32 %v560, %v560
        %v593 = vmul.f32 %v561, %v561
        %v594 = vmul.f32 %v562, %v562
        %v595 = vmul.f32 %v563, %v563
        %v596 = vmul.f32 %v564, %v564
        %v597 = vmul.f32 %v565, %v565
        %v598 = vmul.f32 %v566, %v566
        %v599 = vmul.f32 %v567, %v567
        %v600 = vmul.f32 %v568, %v568
        %v601 = vmul.f32 %v569, %v569
        %v602 = vmul.f32 %v570, %v570
        %v603 = vmul.f32 %v571, %v571
        %v604 = vmul.f32 %v572, %v572
        %v605 = vmul.f32 %v573, %v573
        %v606 = vmul.f32 %v574, %v574
        %v607 = vsel %vm391, %v575, 0.0
        %v608 = vsel %vm391, %v576, 0.0
        %v609 = vadd.f32 %v607, %v608
        %v610 = vsel %vm391, %v577, 0.0
        %v611 = vadd.f32 %v609, %v610
        %v612 = vsel %vm391, %v578, 0.0
        %v613 = vadd.f32 %v611, %v612
        %v614 = vsel %vm391, %v579, 0.0
        %v615 = vadd.f32 %v613, %v614
        %v616 = vsel %vm391, %v580, 0.0
        %v617 = vadd.f32 %v615, %v616
        %v618 = vsel %vm391, %v581, 0.0
        %v619 = vadd.f32 %v617, %v618
        %v620 = vsel %vm391, %v582, 0.0
        %v621 = vadd.f32 %v619, %v620
        %v622 = vsel %vm391, %v583, 0.0
        %v623 = vadd.f32 %v621, %v622
        %v624 = vsel %vm391, %v584, 0.0
        %v625 = vadd.f32 %v623, %v624
        %v626 = vsel %vm391, %v585, 0.0
        %v627 = vadd.f32 %v625, %v626
        %v628 = vsel %vm391, %v586, 0.0
        %v629 = vadd.f32 %v627, %v628
        %v630 = vsel %vm391, %v587, 0.0
        %v631 = vadd.f32 %v629, %v630
        %v632 = vsel %vm391, %v588, 0.0
        %v633 = vadd.f32 %v631, %v632
        %v634 = vsel %vm391, %v589, 0.0
        %v635 = vadd.f32 %v633, %v634
        %v636 = vsel %vm391, %v590, 0.0
        %v637 = vadd.f32 %v635, %v636
        %v638 = vsel %vm391, %v591, 0.0
        %v639 = vadd.f32 %v637, %v638
        %v640 = vsel %vm391, %v592, 0.0
        %v641 = vadd.f32 %v639, %v640
        %v642 = vsel %vm391, %v593, 0.0
        %v643 = vadd.f32 %v641, %v642
        %v644 = vsel %vm391, %v594, 0.0
        %v645 = vadd.f32 %v643, %v644
        %v646 = vsel %vm391, %v595, 0.0
        %v647 = vadd.f32 %v645, %v646
        %v648 = vsel %vm391, %v596, 0.0
        %v649 = vadd.f32 %v647, %v648
        %v650 = vsel %vm391, %v597, 0.0
        %v651 = vadd.f32 %v649, %v650
        %v652 = vsel %vm391, %v598, 0.0
        %v653 = vadd.f32 %v651, %v652
        %v654 = vsel %vm391, %v599, 0.0
        %v655 = vadd.f32 %v653, %v654
        %v656 = vsel %vm391, %v600, 0.0
        %v657 = vadd.f32 %v655, %v656
        %v658 = vsel %vm391, %v601, 0.0
        %v659 = vadd.f32 %v657, %v658
        %v660 = vsel %vm391, %v602, 0.0
        %v661 = vadd.f32 %v659, %v660
        %v662 = vsel %vm391, %v603, 0.0
        %v663 = vadd.f32 %v661, %v662
        %v664 = vsel %vm391, %v604, 0.0
        %v665 = vadd.f32 %v663, %v664
        %v666 = vsel %vm391, %v605, 0.0
        %v667 = vadd.f32 %v665, %v666
        %v668 = vsel %vm391, %v606, 0.0
        %v669 = vadd.f32 %v667, %v668
        %v670 = vrot.slane %v669, 4
        %v671 = vadd.f32 %v669, %v670
        %v672 = vrot.slane %v671, 2
        %v673 = vadd.f32 %v671, %v672
        %v674 = vrot.slane %v673, 1
        %v675 = vadd.f32 %v673, %v674
        %v677 = vsel %vm391, %v675, 0
        %679 = vmatprep.subr.mxu0 0.0
        %680 = vmatpush1.msra.mxu0 %v467
        %681 = vmatprep.subr.mxu0 0.0
        %682 = vmatpush1.msra.mxu0 0.0
        %683 = vmatprep.subr.mxu0 0.0
        %684 = vmatpush1.msra.mxu0 0.0
        %685 = vmatprep.subr.mxu0 0.0
        %686 = vmatpush1.msra.mxu0 0.0
        %687 = vmatprep.subr.mxu0 0.0
        %688 = vmatpush1.msra.mxu0 0.0
        %689 = vmatprep.subr.mxu0 0.0
        %690 = vmatpush1.msra.mxu0 0.0
        %691 = vmatprep.subr.mxu0 0.0
        %692 = vmatpush1.msra.mxu0 0.0
        %693 = vmatprep.subr.mxu0 0.0
        %694 = vmatpush1.msra.mxu0 0.0
        %695 = vmatprep.subr.mxu0 0.0
        %696 = vmatpush1.msra.mxu0 0.0
        %697 = vmatprep.subr.mxu0 0.0
        %698 = vmatpush1.msra.mxu0 0.0
        %699 = vmatprep.subr.mxu0 0.0
        %700 = vmatpush1.msra.mxu0 0.0
        %701 = vmatprep.subr.mxu0 0.0
        %702 = vmatpush1.msra.mxu0 0.0
        %703 = vmatprep.subr.mxu0 0.0
        %704 = vmatpush1.msra.mxu0 0.0
        %705 = vmatprep.subr.mxu0 0.0
        %706 = vmatpush1.msra.mxu0 0.0
        %707 = vmatprep.subr.mxu0 0.0
        %708 = vmatpush1.msra.mxu0 0.0
        %709 = vmatprep.subr.mxu0 0.0
        %710 = vmatpush1.msra.mxu0 0.0
        %711 = vmatprep.subr.mxu0 0.0
        %712 = vmatpush1.msra.mxu0 0.0
        %713 = vmatprep.subr.mxu0 0.0
        %714 = vmatpush1.msra.mxu0 0.0
        %715 = vmatprep.subr.mxu0 0.0
        %716 = vmatpush1.msra.mxu0 0.0
        %717 = vmatprep.subr.mxu0 0.0
        %718 = vmatpush1.msra.mxu0 0.0
        %719 = vmatprep.subr.mxu0 0.0
        %720 = vmatpush1.msra.mxu0 0.0
        %721 = vmatprep.subr.mxu0 0.0
        %722 = vmatpush1.msra.mxu0 0.0
        %723 = vmatprep.subr.mxu0 0.0
        %724 = vmatpush1.msra.mxu0 0.0
        %725 = vmatprep.subr.mxu0 0.0
        %726 = vmatpush1.msra.mxu0 0.0
        %727 = vmatprep.subr.mxu0 0.0
        %728 = vmatpush1.msra.mxu0 0.0
        %729 = vmatprep.subr.mxu0 0.0
        %730 = vmatpush1.msra.mxu0 0.0
        %731 = vmatprep.subr.mxu0 0.0
        %732 = vmatpush1.msra.mxu0 0.0
        %733 = vmatprep.subr.mxu0 0.0
        %734 = vmatpush1.msra.mxu0 0.0
        %735 = vmatprep.subr.mxu0 0.0
        %736 = vmatpush1.msra.mxu0 0.0
        %737 = vmatprep.subr.mxu0 0.0
        %738 = vmatpush1.msra.mxu0 0.0
        %739 = vmatprep.subr.mxu0 0.0
        %740 = vmatpush1.msra.mxu0 0.0
        %741 = vmatprep.subr.mxu0 0.0
        %742 = vmatpush1.msra.mxu0 0.0
        %743 = vmatprep.mubr.f32.mxu0 0.0
        %744 = vmatmul.mubr.f32.gmra.mrb[0].mxu0 %v677
        %v745 = vpop.f32.mrb[0].mxu0
        %v746 = vadd.f32 1e-06, %v745
        %v747 = vpop.f32.mrb[0].mxu0
        %748 = vdwg.mxu0
        %v749 = vrsqrt.pop %v746
        %v750 = vld [vmem:[%s2] sm:$0x1]
        %v751 = vmul.f32 %v749, %v750
        %v752 = vlaneseq
        %v753 = vshrl.u32 %v752, 7
        %v754 = vsub.s32 0, %v753
        %v755 = vrot.slane %v751, %v754
        %v756 = vmul.f32 %v543, %v755
        %v757 = vmul.f32 %v544, %v755
        %v758 = vmul.f32 %v545, %v755
        %v759 = vmul.f32 %v546, %v755
        %v760 = vmul.f32 %v547, %v755
        %v761 = vmul.f32 %v548, %v755
        %v762 = vmul.f32 %v549, %v755
        %v763 = vmul.f32 %v550, %v755
        %v764 = vmul.f32 %v551, %v755
        %v765 = vmul.f32 %v552, %v755
        %v766 = vmul.f32 %v553, %v755
        %v767 = vmul.f32 %v554, %v755
        %v768 = vmul.f32 %v555, %v755
        %v769 = vmul.f32 %v556, %v755
        %v770 = vmul.f32 %v557, %v755
        %v771 = vmul.f32 %v558, %v755
        %v772 = vmul.f32 %v559, %v755
        %v773 = vmul.f32 %v560, %v755
        %v774 = vmul.f32 %v561, %v755
        %v775 = vmul.f32 %v562, %v755
        %v776 = vmul.f32 %v563, %v755
        %v777 = vmul.f32 %v564, %v755
        %v778 = vmul.f32 %v565, %v755
        %v779 = vmul.f32 %v566, %v755
        %v780 = vmul.f32 %v567, %v755
        %v781 = vmul.f32 %v568, %v755
        %v782 = vmul.f32 %v569, %v755
        %v783 = vmul.f32 %v570, %v755
        %v784 = vmul.f32 %v571, %v755
        %v785 = vmul.f32 %v572, %v755
        %v786 = vmul.f32 %v573, %v755
        %v787 = vmul.f32 %v574, %v755
        %v788 = vld [vmem:[%s3] sm:$0x1]
        %v790 = vlaneseq
        %v791 = vshrl.u32 %v790, 7
        %v792 = vsub.s32 0, %v791
        %v793 = vrot.slane %v788, %v792
        %v795 = vadd.f32 %v756, %v793
        %v796 = vadd.f32 %v757, %v793
        %v797 = vadd.f32 %v758, %v793
        %v798 = vadd.f32 %v759, %v793
        %v799 = vadd.f32 %v760, %v793
        %v800 = vadd.f32 %v761, %v793
        %v801 = vadd.f32 %v762, %v793
        %v802 = vadd.f32 %v763, %v793
        %v803 = vadd.f32 %v764, %v793
        %v804 = vadd.f32 %v765, %v793
        %v805 = vadd.f32 %v766, %v793
        %v806 = vadd.f32 %v767, %v793
        %v807 = vadd.f32 %v768, %v793
        %v808 = vadd.f32 %v769, %v793
        %v809 = vadd.f32 %v770, %v793
        %v810 = vadd.f32 %v771, %v793
        %v811 = vadd.f32 %v772, %v793
        %v812 = vadd.f32 %v773, %v793
        %v813 = vadd.f32 %v774, %v793
        %v814 = vadd.f32 %v775, %v793
        %v815 = vadd.f32 %v776, %v793
        %v816 = vadd.f32 %v777, %v793
        %v817 = vadd.f32 %v778, %v793
        %v818 = vadd.f32 %v779, %v793
        %v819 = vadd.f32 %v780, %v793
        %v820 = vadd.f32 %v781, %v793
        %v821 = vadd.f32 %v782, %v793
        %v822 = vadd.f32 %v783, %v793
        %v823 = vadd.f32 %v784, %v793
        %v824 = vadd.f32 %v785, %v793
        %v825 = vadd.f32 %v786, %v793
        %v826 = vadd.f32 %v787, %v793
        %v827 = vsub.f32 0.0, %v795
        %v828 = vsub.f32 0.0, %v796
        %v829 = vsub.f32 0.0, %v797
        %v830 = vsub.f32 0.0, %v798
        %v831 = vsub.f32 0.0, %v799
        %v832 = vsub.f32 0.0, %v800
        %v833 = vsub.f32 0.0, %v801
        %v834 = vsub.f32 0.0, %v802
        %v835 = vsub.f32 0.0, %v803
        %v836 = vsub.f32 0.0, %v804
        %v837 = vsub.f32 0.0, %v805
        %v838 = vsub.f32 0.0, %v806
        %v839 = vsub.f32 0.0, %v807
        %v840 = vsub.f32 0.0, %v808
        %v841 = vsub.f32 0.0, %v809
        %v842 = vsub.f32 0.0, %v810
        %v843 = vsub.f32 0.0, %v811
        %v844 = vsub.f32 0.0, %v812
        %v845 = vsub.f32 0.0, %v813
        %v846 = vsub.f32 0.0, %v814
        %v847 = vsub.f32 0.0, %v815
        %v848 = vsub.f32 0.0, %v816
        %v849 = vsub.f32 0.0, %v817
        %v850 = vsub.f32 0.0, %v818
        %v851 = vsub.f32 0.0, %v819
        %v852 = vsub.f32 0.0, %v820
        %v853 = vsub.f32 0.0, %v821
        %v854 = vsub.f32 0.0, %v822
        %v855 = vsub.f32 0.0, %v823
        %v856 = vsub.f32 0.0, %v824
        %v857 = vsub.f32 0.0, %v825
        %v858 = vsub.f32 0.0, %v826
        %v859 = vmul.f32 %v827, 1.442695
        %v860 = vpow.pop %v859
        %v861 = vmul.f32 %v828, 1.442695
        %v862 = vpow.pop %v861
        %v863 = vmul.f32 %v829, 1.442695
        %v864 = vpow.pop %v863
        %v865 = vmul.f32 %v830, 1.442695
        %v866 = vpow.pop %v865
        %v867 = vmul.f32 %v831, 1.442695
        %v868 = vpow.pop %v867
        %v869 = vmul.f32 %v832, 1.442695
        %v870 = vpow.pop %v869
        %v871 = vmul.f32 %v833, 1.442695
        %v872 = vpow.pop %v871
        %v873 = vmul.f32 %v834, 1.442695
        %v874 = vpow.pop %v873
        %v875 = vmul.f32 %v835, 1.442695
        %v876 = vpow.pop %v875
        %v877 = vmul.f32 %v836, 1.442695
        %v878 = vpow.pop %v877
        %v879 = vmul.f32 %v837, 1.442695
        %v880 = vpow.pop %v879
        %v881 = vmul.f32 %v838, 1.442695
        %v882 = vpow.pop %v881
        %v883 = vmul.f32 %v839, 1.442695
        %v884 = vpow.pop %v883
        %v885 = vmul.f32 %v840, 1.442695
        %v886 = vpow.pop %v885
        %v887 = vmul.f32 %v841, 1.442695
        %v888 = vpow.pop %v887
        %v889 = vmul.f32 %v842, 1.442695
        %v890 = vpow.pop %v889
        %v891 = vmul.f32 %v843, 1.442695
        %v892 = vpow.pop %v891
        %v893 = vmul.f32 %v844, 1.442695
        %v894 = vpow.pop %v893
        %v895 = vmul.f32 %v845, 1.442695
        %v896 = vpow.pop %v895
        %v897 = vmul.f32 %v846, 1.442695
        %v898 = vpow.pop %v897
        %v899 = vmul.f32 %v847, 1.442695
        %v900 = vpow.pop %v899
        %v901 = vmul.f32 %v848, 1.442695
        %v902 = vpow.pop %v901
        %v903 = vmul.f32 %v849, 1.442695
        %v904 = vpow.pop %v903
        %v905 = vmul.f32 %v850, 1.442695
        %v906 = vpow.pop %v905
        %v907 = vmul.f32 %v851, 1.442695
        %v908 = vpow.pop %v907
        %v909 = vmul.f32 %v852, 1.442695
        %v910 = vpow.pop %v909
        %v911 = vmul.f32 %v853, 1.442695
        %v912 = vpow.pop %v911
        %v913 = vmul.f32 %v854, 1.442695
        %v914 = vpow.pop %v913
        %v915 = vmul.f32 %v855, 1.442695
        %v916 = vpow.pop %v915
        %v917 = vmul.f32 %v856, 1.442695
        %v918 = vpow.pop %v917
        %v919 = vmul.f32 %v857, 1.442695
        %v920 = vpow.pop %v919
        %v921 = vmul.f32 %v858, 1.442695
        %v922 = vpow.pop %v921
        %v923 = vadd.f32 %v860, 1.0
        %v924 = vadd.f32 %v862, 1.0
        %v925 = vadd.f32 %v864, 1.0
        %v926 = vadd.f32 %v866, 1.0
        %v927 = vadd.f32 %v868, 1.0
        %v928 = vadd.f32 %v870, 1.0
        %v929 = vadd.f32 %v872, 1.0
        %v930 = vadd.f32 %v874, 1.0
        %v931 = vadd.f32 %v876, 1.0
        %v932 = vadd.f32 %v878, 1.0
        %v933 = vadd.f32 %v880, 1.0
        %v934 = vadd.f32 %v882, 1.0
        %v935 = vadd.f32 %v884, 1.0
        %v936 = vadd.f32 %v886, 1.0
        %v937 = vadd.f32 %v888, 1.0
        %v938 = vadd.f32 %v890, 1.0
        %v939 = vadd.f32 %v892, 1.0
        %v940 = vadd.f32 %v894, 1.0
        %v941 = vadd.f32 %v896, 1.0
        %v942 = vadd.f32 %v898, 1.0
        %v943 = vadd.f32 %v900, 1.0
        %v944 = vadd.f32 %v902, 1.0
        %v945 = vadd.f32 %v904, 1.0
        %v946 = vadd.f32 %v906, 1.0
        %v947 = vadd.f32 %v908, 1.0
        %v948 = vadd.f32 %v910, 1.0
        %v949 = vadd.f32 %v912, 1.0
        %v950 = vadd.f32 %v914, 1.0
        %v951 = vadd.f32 %v916, 1.0
        %v952 = vadd.f32 %v918, 1.0
        %v953 = vadd.f32 %v920, 1.0
        %v954 = vadd.f32 %v922, 1.0
        %v955 = vrcp.pop %v923
        %v956 = vmul.f32 1.0, %v955
        %v957 = vrcp.pop %v924
        %v958 = vmul.f32 1.0, %v957
        %v959 = vrcp.pop %v925
        %v960 = vmul.f32 1.0, %v959
        %v961 = vrcp.pop %v926
        %v962 = vmul.f32 1.0, %v961
        %v963 = vrcp.pop %v927
        %v964 = vmul.f32 1.0, %v963
        %v965 = vrcp.pop %v928
        %v966 = vmul.f32 1.0, %v965
        %v967 = vrcp.pop %v929
        %v968 = vmul.f32 1.0, %v967
        %v969 = vrcp.pop %v930
        %v970 = vmul.f32 1.0, %v969
        %v971 = vrcp.pop %v931
        %v972 = vmul.f32 1.0, %v971
        %v973 = vrcp.pop %v932
        %v974 = vmul.f32 1.0, %v973
        %v975 = vrcp.pop %v933
        %v976 = vmul.f32 1.0, %v975
        %v977 = vrcp.pop %v934
        %v978 = vmul.f32 1.0, %v977
        %v979 = vrcp.pop %v935
        %v980 = vmul.f32 1.0, %v979
        %v981 = vrcp.pop %v936
        %v982 = vmul.f32 1.0, %v981
        %v983 = vrcp.pop %v937
        %v984 = vmul.f32 1.0, %v983
        %v985 = vrcp.pop %v938
        %v986 = vmul.f32 1.0, %v985
        %v987 = vrcp.pop %v939
        %v988 = vmul.f32 1.0, %v987
        %v989 = vrcp.pop %v940
        %v990 = vmul.f32 1.0, %v989
        %v991 = vrcp.pop %v941
        %v992 = vmul.f32 1.0, %v991
        %v993 = vrcp.pop %v942
        %v994 = vmul.f32 1.0, %v993
        %v995 = vrcp.pop %v943
        %v996 = vmul.f32 1.0, %v995
        %v997 = vrcp.pop %v944
        %v998 = vmul.f32 1.0, %v997
        %v999 = vrcp.pop %v945
        %v1000 = vmul.f32 1.0, %v999
        %v1001 = vrcp.pop %v946
        %v1002 = vmul.f32 1.0, %v1001
        %v1003 = vrcp.pop %v947
        %v1004 = vmul.f32 1.0, %v1003
        %v1005 = vrcp.pop %v948
        %v1006 = vmul.f32 1.0, %v1005
        %v1007 = vrcp.pop %v949
        %v1008 = vmul.f32 1.0, %v1007
        %v1009 = vrcp.pop %v950
        %v1010 = vmul.f32 1.0, %v1009
        %v1011 = vrcp.pop %v951
        %v1012 = vmul.f32 1.0, %v1011
        %v1013 = vrcp.pop %v952
        %v1014 = vmul.f32 1.0, %v1013
        %v1015 = vrcp.pop %v953
        %v1016 = vmul.f32 1.0, %v1015
        %v1017 = vrcp.pop %v954
        %v1018 = vmul.f32 1.0, %v1017
        %v1019 = vmul.f32 %v795, %v956
        %v1020 = vmul.f32 %v796, %v958
        %v1021 = vmul.f32 %v797, %v960
        %v1022 = vmul.f32 %v798, %v962
        %v1023 = vmul.f32 %v799, %v964
        %v1024 = vmul.f32 %v800, %v966
        %v1025 = vmul.f32 %v801, %v968
        %v1026 = vmul.f32 %v802, %v970
        %v1027 = vmul.f32 %v803, %v972
        %v1028 = vmul.f32 %v804, %v974
        %v1029 = vmul.f32 %v805, %v976
        %v1030 = vmul.f32 %v806, %v978
        %v1031 = vmul.f32 %v807, %v980
        %v1032 = vmul.f32 %v808, %v982
        %v1033 = vmul.f32 %v809, %v984
        %v1034 = vmul.f32 %v810, %v986
        %v1035 = vmul.f32 %v811, %v988
        %v1036 = vmul.f32 %v812, %v990
        %v1037 = vmul.f32 %v813, %v992
        %v1038 = vmul.f32 %v814, %v994
        %v1039 = vmul.f32 %v815, %v996
        %v1040 = vmul.f32 %v816, %v998
        %v1041 = vmul.f32 %v817, %v1000
        %v1042 = vmul.f32 %v818, %v1002
        %v1043 = vmul.f32 %v819, %v1004
        %v1044 = vmul.f32 %v820, %v1006
        %v1045 = vmul.f32 %v821, %v1008
        %v1046 = vmul.f32 %v822, %v1010
        %v1047 = vmul.f32 %v823, %v1012
        %v1048 = vmul.f32 %v824, %v1014
        %v1049 = vmul.f32 %v825, %v1016
        %v1050 = vmul.f32 %v826, %v1018
        %1051 = vst.msk [vmem:[#allocation2] sm:$0xff] %vm391, 0.0
        %1052 = vst.msk [vmem:[#allocation2 + $0x8] sm:$0xff] %vm391, 0.0
        %vm1053 = vcmask 25600
        %1054 = vst.msk [vmem:[#allocation2 + $0x10] sm:$0x3] %vm1053, 0.0
        %1055 = vst.msk [vmem:[#allocation2 + $0x18] sm:$0xff] %vm391, 0.0
        %1056 = vst.msk [vmem:[#allocation2 + $0x20] sm:$0xff] %vm391, 0.0
        %1057 = vst.msk [vmem:[#allocation2 + $0x28] sm:$0x3] %vm1053, 0.0
        %1058 = vst.msk [vmem:[#allocation2 + $0x30] sm:$0xff] %vm391, 0.0
        %1059 = vst.msk [vmem:[#allocation2 + $0x38] sm:$0xff] %vm391, 0.0
        %1060 = vst.msk [vmem:[#allocation2 + $0x40] sm:$0x3] %vm1053, 0.0
        %1061 = vst.msk [vmem:[#allocation2 + $0x48] sm:$0xff] %vm391, 0.0
        %1062 = vst.msk [vmem:[#allocation2 + $0x50] sm:$0xff] %vm391, 0.0
        %1063 = vst.msk [vmem:[#allocation2 + $0x58] sm:$0x3] %vm1053, 0.0
        %1064 = vst.msk [vmem:[#allocation2 + $0x60] sm:$0xff] %vm391, 0.0
        %1065 = vst.msk [vmem:[#allocation2 + $0x68] sm:$0xff] %vm391, 0.0
        %1066 = vst.msk [vmem:[#allocation2 + $0x70] sm:$0x3] %vm1053, 0.0
        %1067 = vst.msk [vmem:[#allocation2 + $0x78] sm:$0xff] %vm391, 0.0
        %1068 = vst.msk [vmem:[#allocation2 + $0x80] sm:$0xff] %vm391, 0.0
        %1069 = vst.msk [vmem:[#allocation2 + $0x88] sm:$0x3] %vm1053, 0.0
        %1070 = vst.msk [vmem:[#allocation2 + $0x90] sm:$0xff] %vm391, 0.0
        %1071 = vst.msk [vmem:[#allocation2 + $0x98] sm:$0xff] %vm391, 0.0
        %1072 = vst.msk [vmem:[#allocation2 + $0xa0] sm:$0x3] %vm1053, 0.0
        %1073 = vst.msk [vmem:[#allocation2 + $0xa8] sm:$0xff] %vm391, 0.0
        %1074 = vst.msk [vmem:[#allocation2 + $0xb0] sm:$0xff] %vm391, 0.0
        %1075 = vst.msk [vmem:[#allocation2 + $0xb8] sm:$0x3] %vm1053, 0.0
        %1076 = vst.msk [vmem:[#allocation2 + $0xc0] sm:$0xff] %vm391, 0.0
        %1077 = vst.msk [vmem:[#allocation2 + $0xc8] sm:$0xff] %vm391, 0.0
        %1078 = vst.msk [vmem:[#allocation2 + $0xd0] sm:$0x3] %vm1053, 0.0
        %1079 = vst.msk [vmem:[#allocation2 + $0xd8] sm:$0xff] %vm391, 0.0
        %1080 = vst.msk [vmem:[#allocation2 + $0xe0] sm:$0xff] %vm391, 0.0
        %1081 = vst.msk [vmem:[#allocation2 + $0xe8] sm:$0x3] %vm1053, 0.0
        %1082 = vst.msk [vmem:[#allocation2 + $0xf0] sm:$0xff] %vm391, 0.0
        %1083 = vst.msk [vmem:[#allocation2 + $0xf8] sm:$0xff] %vm391, 0.0
        %1084 = vst.msk [vmem:[#allocation2 + $0x100] sm:$0x3] %vm1053, 0.0
        %1085 = vst.msk [vmem:[#allocation2 + $0x108] sm:$0xff] %vm391, 0.0
        %1086 = vst.msk [vmem:[#allocation2 + $0x110] sm:$0xff] %vm391, 0.0
        %1087 = vst.msk [vmem:[#allocation2 + $0x118] sm:$0x3] %vm1053, 0.0
        %1088 = vst.msk [vmem:[#allocation2 + $0x120] sm:$0xff] %vm391, 0.0
        %1089 = vst.msk [vmem:[#allocation2 + $0x128] sm:$0xff] %vm391, 0.0
        %1090 = vst.msk [vmem:[#allocation2 + $0x130] sm:$0x3] %vm1053, 0.0
        %1091 = vst.msk [vmem:[#allocation2 + $0x138] sm:$0xff] %vm391, 0.0
        %1092 = vst.msk [vmem:[#allocation2 + $0x140] sm:$0xff] %vm391, 0.0
        %1093 = vst.msk [vmem:[#allocation2 + $0x148] sm:$0x3] %vm1053, 0.0
        %1094 = vst.msk [vmem:[#allocation2 + $0x150] sm:$0xff] %vm391, 0.0
        %1095 = vst.msk [vmem:[#allocation2 + $0x158] sm:$0xff] %vm391, 0.0
        %1096 = vst.msk [vmem:[#allocation2 + $0x160] sm:$0x3] %vm1053, 0.0
        %1097 = vst.msk [vmem:[#allocation2 + $0x168] sm:$0xff] %vm391, 0.0
        %1098 = vst.msk [vmem:[#allocation2 + $0x170] sm:$0xff] %vm391, 0.0
        %1099 = vst.msk [vmem:[#allocation2 + $0x178] sm:$0x3] %vm1053, 0.0
        %1100 = vst.msk [vmem:[#allocation2 + $0x180] sm:$0xff] %vm391, 0.0
        %1101 = vst.msk [vmem:[#allocation2 + $0x188] sm:$0xff] %vm391, 0.0
        %1102 = vst.msk [vmem:[#allocation2 + $0x190] sm:$0x3] %vm1053, 0.0
        %1103 = vst.msk [vmem:[#allocation2 + $0x198] sm:$0xff] %vm391, 0.0
        %1104 = vst.msk [vmem:[#allocation2 + $0x1a0] sm:$0xff] %vm391, 0.0
        %1105 = vst.msk [vmem:[#allocation2 + $0x1a8] sm:$0x3] %vm1053, 0.0
        %s1106 = scalar_lea.vmem [#allocation2], 24
        %1107 = vst.msk [vmem:[%s1106 + $0x1] sm:$0xff] %vm391, %v1019
        %1108 = vst.msk [vmem:[%s1106 + $0x9] sm:$0xff] %vm391, %v1020
        %1109 = vst.msk [vmem:[%s1106 + $0x19] sm:$0xff] %vm391, %v1021
        %1110 = vst.msk [vmem:[%s1106 + $0x21] sm:$0xff] %vm391, %v1022
        %1111 = vst.msk [vmem:[%s1106 + $0x31] sm:$0xff] %vm391, %v1023
        %1112 = vst.msk [vmem:[%s1106 + $0x39] sm:$0xff] %vm391, %v1024
        %1113 = vst.msk [vmem:[%s1106 + $0x49] sm:$0xff] %vm391, %v1025
        %1114 = vst.msk [vmem:[%s1106 + $0x51] sm:$0xff] %vm391, %v1026
        %1115 = vst.msk [vmem:[%s1106 + $0x61] sm:$0xff] %vm391, %v1027
        %1116 = vst.msk [vmem:[%s1106 + $0x69] sm:$0xff] %vm391, %v1028
        %1117 = vst.msk [vmem:[%s1106 + $0x79] sm:$0xff] %vm391, %v1029
        %1118 = vst.msk [vmem:[%s1106 + $0x81] sm:$0xff] %vm391, %v1030
        %1119 = vst.msk [vmem:[%s1106 + $0x91] sm:$0xff] %vm391, %v1031
        %1120 = vst.msk [vmem:[%s1106 + $0x99] sm:$0xff] %vm391, %v1032
        %1121 = vst.msk [vmem:[%s1106 + $0xa9] sm:$0xff] %vm391, %v1033
        %1122 = vst.msk [vmem:[%s1106 + $0xb1] sm:$0xff] %vm391, %v1034
        %1123 = vst.msk [vmem:[%s1106 + $0xc1] sm:$0xff] %vm391, %v1035
        %1124 = vst.msk [vmem:[%s1106 + $0xc9] sm:$0xff] %vm391, %v1036
        %1125 = vst.msk [vmem:[%s1106 + $0xd9] sm:$0xff] %vm391, %v1037
        %1126 = vst.msk [vmem:[%s1106 + $0xe1] sm:$0xff] %vm391, %v1038
        %1127 = vst.msk [vmem:[%s1106 + $0xf1] sm:$0xff] %vm391, %v1039
        %1128 = vst.msk [vmem:[%s1106 + $0xf9] sm:$0xff] %vm391, %v1040
        %1129 = vst.msk [vmem:[%s1106 + $0x109] sm:$0xff] %vm391, %v1041
        %1130 = vst.msk [vmem:[%s1106 + $0x111] sm:$0xff] %vm391, %v1042
        %1131 = vst.msk [vmem:[%s1106 + $0x121] sm:$0xff] %vm391, %v1043
        %1132 = vst.msk [vmem:[%s1106 + $0x129] sm:$0xff] %vm391, %v1044
        %1133 = vst.msk [vmem:[%s1106 + $0x139] sm:$0xff] %vm391, %v1045
        %1134 = vst.msk [vmem:[%s1106 + $0x141] sm:$0xff] %vm391, %v1046
        %1135 = vst.msk [vmem:[%s1106 + $0x151] sm:$0xff] %vm391, %v1047
        %1136 = vst.msk [vmem:[%s1106 + $0x159] sm:$0xff] %vm391, %v1048
        %1137 = vst.msk [vmem:[%s1106 + $0x169] sm:$0xff] %vm391, %v1049
        %1138 = vst.msk [vmem:[%s1106 + $0x171] sm:$0xff] %vm391, %v1050
      $region52: #{tpu_custom_call.1} parent=47 // pred_fallthru
        _
      %v1139 = vld [vmem:[#allocation2] sm:$0xff]
      %v1140 = vld [vmem:[#allocation2 + $0x8] sm:$0xff]
      %v1141 = vld [vmem:[#allocation2 + $0x10] sm:$0x3]
      %v1142 = vld [vmem:[#allocation2 + $0x18] sm:$0xff]
      %v1143 = vld [vmem:[#allocation2 + $0x20] sm:$0xff]
      %v1144 = vld [vmem:[#allocation2 + $0x28] sm:$0x3]
      %v1145 = vld [vmem:[#allocation2 + $0x30] sm:$0xff]
      %v1146 = vld [vmem:[#allocation2 + $0x38] sm:$0xff]
      %v1147 = vld [vmem:[#allocation2 + $0x40] sm:$0x3]
      %v1148 = vld [vmem:[#allocation2 + $0x48] sm:$0xff]
      %v1149 = vld [vmem:[#allocation2 + $0x50] sm:$0xff]
      %v1150 = vld [vmem:[#allocation2 + $0x58] sm:$0x3]
      %v1151 = vld [vmem:[#allocation2 + $0x60] sm:$0xff]
      %v1152 = vld [vmem:[#allocation2 + $0x68] sm:$0xff]
      %v1153 = vld [vmem:[#allocation2 + $0x70] sm:$0x3]
      %v1154 = vld [vmem:[#allocation2 + $0x78] sm:$0xff]
      %v1155 = vld [vmem:[#allocation2 + $0x80] sm:$0xff]
      %v1156 = vld [vmem:[#allocation2 + $0x88] sm:$0x3]
      %v1157 = vld [vmem:[#allocation2 + $0x90] sm:$0xff]
      %v1158 = vld [vmem:[#allocation2 + $0x98] sm:$0xff]
      %v1159 = vld [vmem:[#allocation2 + $0xa0] sm:$0x3]
      %v1160 = vld [vmem:[#allocation2 + $0xa8] sm:$0xff]
      %v1161 = vld [vmem:[#allocation2 + $0xb0] sm:$0xff]
      %v1162 = vld [vmem:[#allocation2 + $0xb8] sm:$0x3]
      %v1163 = vld [vmem:[#allocation2 + $0xc0] sm:$0xff]
      %v1164 = vld [vmem:[#allocation2 + $0xc8] sm:$0xff]
      %v1165 = vld [vmem:[#allocation2 + $0xd0] sm:$0x3]
      %v1166 = vld [vmem:[#allocation2 + $0xd8] sm:$0xff]
      %v1167 = vld [vmem:[#allocation2 + $0xe0] sm:$0xff]
      %v1168 = vld [vmem:[#allocation2 + $0xe8] sm:$0x3]
      %v1169 = vld [vmem:[#allocation2 + $0xf0] sm:$0xff]
      %v1170 = vld [vmem:[#allocation2 + $0xf8] sm:$0xff]
      %v1171 = vld [vmem:[#allocation2 + $0x100] sm:$0x3]
      %v1172 = vld [vmem:[#allocation2 + $0x108] sm:$0xff]
      %v1173 = vld [vmem:[#allocation2 + $0x110] sm:$0xff]
      %v1174 = vld [vmem:[#allocation2 + $0x118] sm:$0x3]
      %v1175 = vld [vmem:[#allocation2 + $0x120] sm:$0xff]
      %v1176 = vld [vmem:[#allocation2 + $0x128] sm:$0xff]
      %v1177 = vld [vmem:[#allocation2 + $0x130] sm:$0x3]
      %v1178 = vld [vmem:[#allocation2 + $0x138] sm:$0xff]
      %v1179 = vld [vmem:[#allocation2 + $0x140] sm:$0xff]
      %v1180 = vld [vmem:[#allocation2 + $0x148] sm:$0x3]
      %v1181 = vld [vmem:[#allocation2 + $0x150] sm:$0xff]
      %v1182 = vld [vmem:[#allocation2 + $0x158] sm:$0xff]
      %v1183 = vld [vmem:[#allocation2 + $0x160] sm:$0x3]
      %v1184 = vld [vmem:[#allocation2 + $0x168] sm:$0xff]
      %v1185 = vld [vmem:[#allocation2 + $0x170] sm:$0xff]
      %v1186 = vld [vmem:[#allocation2 + $0x178] sm:$0x3]
      %v1187 = vld [vmem:[#allocation2 + $0x180] sm:$0xff]
      %v1188 = vld [vmem:[#allocation2 + $0x188] sm:$0xff]
      %v1189 = vld [vmem:[#allocation2 + $0x190] sm:$0x3]
      %v1190 = vld [vmem:[#allocation2 + $0x198] sm:$0xff]
      %v1191 = vld [vmem:[#allocation2 + $0x1a0] sm:$0xff]
      %v1192 = vld [vmem:[#allocation2 + $0x1a8] sm:$0x3]
      %v1193 = vld [vmem:[%s340] sm:$0x1]
      %1226 = vrot.lane.b32.xlu0 %v1142, 4
      %v1227 = vpop.permute.xlu0 %1226
      %1228 = vrot.lane.b32.xlu0 %v1143, 4
      %v1229 = vpop.permute.xlu0 %1228
      %1230 = vrot.lane.b32.xlu0 %v1145, 4
      %v1231 = vpop.permute.xlu0 %1230
      %1232 = vrot.lane.b32.xlu0 %v1146, 4
      %v1233 = vpop.permute.xlu0 %1232
      %1234 = vrot.lane.b32.xlu0 %v1148, 4
      %v1235 = vpop.permute.xlu0 %1234
      %1236 = vrot.lane.b32.xlu0 %v1149, 4
      %v1237 = vpop.permute.xlu0 %1236
      %1238 = vrot.lane.b32.xlu0 %v1151, 4
      %v1239 = vpop.permute.xlu0 %1238
      %1240 = vrot.lane.b32.xlu0 %v1152, 4
      %v1241 = vpop.permute.xlu0 %1240
      %1242 = vrot.lane.b32.xlu0 %v1154, 4
      %v1243 = vpop.permute.xlu0 %1242
      %1244 = vrot.lane.b32.xlu0 %v1155, 4
      %v1245 = vpop.permute.xlu0 %1244
      %1246 = vrot.lane.b32.xlu0 %v1157, 4
      %v1247 = vpop.permute.xlu0 %1246
      %1248 = vrot.lane.b32.xlu0 %v1158, 4
      %v1249 = vpop.permute.xlu0 %1248
      %1250 = vrot.lane.b32.xlu0 %v1160, 4
      %v1251 = vpop.permute.xlu0 %1250
      %1252 = vrot.lane.b32.xlu0 %v1161, 4
      %v1253 = vpop.permute.xlu0 %1252
      %1254 = vrot.lane.b32.xlu0 %v1163, 4
      %v1255 = vpop.permute.xlu0 %1254
      %1256 = vrot.lane.b32.xlu0 %v1164, 4
      %v1257 = vpop.permute.xlu0 %1256
      %1258 = vrot.lane.b32.xlu0 %v1166, 4
      %v1259 = vpop.permute.xlu0 %1258
      %1260 = vrot.lane.b32.xlu0 %v1167, 4
      %v1261 = vpop.permute.xlu0 %1260
      %1262 = vrot.lane.b32.xlu0 %v1169, 4
      %v1263 = vpop.permute.xlu0 %1262
      %1264 = vrot.lane.b32.xlu0 %v1170, 4
      %v1265 = vpop.permute.xlu0 %1264
      %1266 = vrot.lane.b32.xlu0 %v1172, 4
      %v1267 = vpop.permute.xlu0 %1266
      %1268 = vrot.lane.b32.xlu0 %v1173, 4
      %v1269 = vpop.permute.xlu0 %1268
      %1270 = vrot.lane.b32.xlu0 %v1175, 4
      %v1271 = vpop.permute.xlu0 %1270
      %1272 = vrot.lane.b32.xlu0 %v1176, 4
      %v1273 = vpop.permute.xlu0 %1272
      %1274 = vrot.lane.b32.xlu0 %v1178, 4
      %v1275 = vpop.permute.xlu0 %1274
      %1276 = vrot.lane.b32.xlu0 %v1179, 4
      %v1277 = vpop.permute.xlu0 %1276
      %1278 = vrot.lane.b32.xlu0 %v1181, 4
      %v1279 = vpop.permute.xlu0 %1278
      %1280 = vrot.lane.b32.xlu0 %v1182, 4
      %v1281 = vpop.permute.xlu0 %1280
      %1282 = vrot.lane.b32.xlu0 %v1184, 4
      %v1283 = vpop.permute.xlu0 %1282
      %1284 = vrot.lane.b32.xlu0 %v1185, 4
      %v1285 = vpop.permute.xlu0 %1284
      %1286 = vrot.lane.b32.xlu0 %v1187, 4
      %v1287 = vpop.permute.xlu0 %1286
      %1288 = vrot.lane.b32.xlu0 %v1188, 4
      %v1289 = vpop.permute.xlu0 %1288
      %1324 = vrot.lane.b32.xlu0 %v1145, 8
      %v1325 = vpop.permute.xlu0 %1324
      %1326 = vrot.lane.b32.xlu0 %v1146, 8
      %v1327 = vpop.permute.xlu0 %1326
      %1328 = vrot.lane.b32.xlu0 %v1148, 8
      %v1329 = vpop.permute.xlu0 %1328
      %1330 = vrot.lane.b32.xlu0 %v1149, 8
      %v1331 = vpop.permute.xlu0 %1330
      %1332 = vrot.lane.b32.xlu0 %v1151, 8
      %v1333 = vpop.permute.xlu0 %1332
      %1334 = vrot.lane.b32.xlu0 %v1152, 8
      %v1335 = vpop.permute.xlu0 %1334
      %1336 = vrot.lane.b32.xlu0 %v1154, 8
      %v1337 = vpop.permute.xlu0 %1336
      %1338 = vrot.lane.b32.xlu0 %v1155, 8
      %v1339 = vpop.permute.xlu0 %1338
      %1340 = vrot.lane.b32.xlu0 %v1157, 8
      %v1341 = vpop.permute.xlu0 %1340
      %1342 = vrot.lane.b32.xlu0 %v1158, 8
      %v1343 = vpop.permute.xlu0 %1342
      %1344 = vrot.lane.b32.xlu0 %v1160, 8
      %v1345 = vpop.permute.xlu0 %1344
      %1346 = vrot.lane.b32.xlu0 %v1161, 8
      %v1347 = vpop.permute.xlu0 %1346
      %1348 = vrot.lane.b32.xlu0 %v1163, 8
      %v1349 = vpop.permute.xlu0 %1348
      %1350 = vrot.lane.b32.xlu0 %v1164, 8
      %v1351 = vpop.permute.xlu0 %1350
      %1352 = vrot.lane.b32.xlu0 %v1166, 8
      %v1353 = vpop.permute.xlu0 %1352
      %1354 = vrot.lane.b32.xlu0 %v1167, 8
      %v1355 = vpop.permute.xlu0 %1354
      %1356 = vrot.lane.b32.xlu0 %v1169, 8
      %v1357 = vpop.permute.xlu0 %1356
      %1358 = vrot.lane.b32.xlu0 %v1170, 8
      %v1359 = vpop.permute.xlu0 %1358
      %1360 = vrot.lane.b32.xlu0 %v1172, 8
      %v1361 = vpop.permute.xlu0 %1360
      %1362 = vrot.lane.b32.xlu0 %v1173, 8
      %v1363 = vpop.permute.xlu0 %1362
      %1364 = vrot.lane.b32.xlu0 %v1175, 8
      %v1365 = vpop.permute.xlu0 %1364
      %1366 = vrot.lane.b32.xlu0 %v1176, 8
      %v1367 = vpop.permute.xlu0 %1366
      %1368 = vrot.lane.b32.xlu0 %v1178, 8
      %v1369 = vpop.permute.xlu0 %1368
      %1370 = vrot.lane.b32.xlu0 %v1179, 8
      %v1371 = vpop.permute.xlu0 %1370
      %1372 = vrot.lane.b32.xlu0 %v1181, 8
      %v1373 = vpop.permute.xlu0 %1372
      %1374 = vrot.lane.b32.xlu0 %v1182, 8
      %v1375 = vpop.permute.xlu0 %1374
      %1376 = vrot.lane.b32.xlu0 %v1184, 8
      %v1377 = vpop.permute.xlu0 %1376
      %1378 = vrot.lane.b32.xlu0 %v1185, 8
      %v1379 = vpop.permute.xlu0 %1378
      %1380 = vrot.lane.b32.xlu0 %v1187, 8
      %v1381 = vpop.permute.xlu0 %1380
      %1382 = vrot.lane.b32.xlu0 %v1188, 8
      %v1383 = vpop.permute.xlu0 %1382
      %1384 = vrot.lane.b32.xlu0 %v1190, 8
      %v1385 = vpop.permute.xlu0 %1384
      %1386 = vrot.lane.b32.xlu0 %v1191, 8
      %v1387 = vpop.permute.xlu0 %1386
      %vm1420 = vcmask 31744
      %v1421 = vsel %vm1420, %v1139, %v1227
      %v1422 = vsel %vm1420, %v1140, %v1229
      %v1423 = vsel %vm1420, %v1142, %v1231
      %v1424 = vsel %vm1420, %v1143, %v1233
      %v1425 = vsel %vm1420, %v1145, %v1235
      %v1426 = vsel %vm1420, %v1146, %v1237
      %v1427 = vsel %vm1420, %v1148, %v1239
      %v1428 = vsel %vm1420, %v1149, %v1241
      %v1429 = vsel %vm1420, %v1151, %v1243
      %v1430 = vsel %vm1420, %v1152, %v1245
      %v1431 = vsel %vm1420, %v1154, %v1247
      %v1432 = vsel %vm1420, %v1155, %v1249
      %v1433 = vsel %vm1420, %v1157, %v1251
      %v1434 = vsel %vm1420, %v1158, %v1253
      %v1435 = vsel %vm1420, %v1160, %v1255
      %v1436 = vsel %vm1420, %v1161, %v1257
      %v1437 = vsel %vm1420, %v1163, %v1259
      %v1438 = vsel %vm1420, %v1164, %v1261
      %v1439 = vsel %vm1420, %v1166, %v1263
      %v1440 = vsel %vm1420, %v1167, %v1265
      %v1441 = vsel %vm1420, %v1169, %v1267
      %v1442 = vsel %vm1420, %v1170, %v1269
      %v1443 = vsel %vm1420, %v1172, %v1271
      %v1444 = vsel %vm1420, %v1173, %v1273
      %v1445 = vsel %vm1420, %v1175, %v1275
      %v1446 = vsel %vm1420, %v1176, %v1277
      %v1447 = vsel %vm1420, %v1178, %v1279
      %v1448 = vsel %vm1420, %v1179, %v1281
      %v1449 = vsel %vm1420, %v1181, %v1283
      %v1450 = vsel %vm1420, %v1182, %v1285
      %v1451 = vsel %vm1420, %v1184, %v1287
      %v1452 = vsel %vm1420, %v1185, %v1289
      %vm1453 = vcmask 64512
      %v1454 = vsel %vm1453, %v1421, %v1325
      %v1455 = vsel %vm1453, %v1422, %v1327
      %v1456 = vsel %vm1453, %v1423, %v1329
      %v1457 = vsel %vm1453, %v1424, %v1331
      %v1458 = vsel %vm1453, %v1425, %v1333
      %v1459 = vsel %vm1453, %v1426, %v1335
      %v1460 = vsel %vm1453, %v1427, %v1337
      %v1461 = vsel %vm1453, %v1428, %v1339
      %v1462 = vsel %vm1453, %v1429, %v1341
      %v1463 = vsel %vm1453, %v1430, %v1343
      %v1464 = vsel %vm1453, %v1431, %v1345
      %v1465 = vsel %vm1453, %v1432, %v1347
      %v1466 = vsel %vm1453, %v1433, %v1349
      %v1467 = vsel %vm1453, %v1434, %v1351
      %v1468 = vsel %vm1453, %v1435, %v1353
      %v1469 = vsel %vm1453, %v1436, %v1355
      %v1470 = vsel %vm1453, %v1437, %v1357
      %v1471 = vsel %vm1453, %v1438, %v1359
      %v1472 = vsel %vm1453, %v1439, %v1361
      %v1473 = vsel %vm1453, %v1440, %v1363
      %v1474 = vsel %vm1453, %v1441, %v1365
      %v1475 = vsel %vm1453, %v1442, %v1367
      %v1476 = vsel %vm1453, %v1443, %v1369
      %v1477 = vsel %vm1453, %v1444, %v1371
      %v1478 = vsel %vm1453, %v1445, %v1373
      %v1479 = vsel %vm1453, %v1446, %v1375
      %v1480 = vsel %vm1453, %v1447, %v1377
      %v1481 = vsel %vm1453, %v1448, %v1379
      %v1482 = vsel %vm1453, %v1449, %v1381
      %v1483 = vsel %vm1453, %v1450, %v1383
      %v1484 = vsel %vm1453, %v1451, %v1385
      %v1485 = vsel %vm1453, %v1452, %v1387
      %v1486 = vld [vmem:[%s337] sm:$0xff]
      %v1487 = vld [vmem:[%s337 + $0x8] sm:$0xf]
      %vm1488 = vcmask 97280
      %v1490 = vsel %vm1488, %v1454, 0
      %v1493 = vsel %vm1488, %v1455, 0
      %v1496 = vsel %vm1488, %v1456, 0
      %v1499 = vsel %vm1488, %v1457, 0
      %v1502 = vsel %vm1488, %v1458, 0
      %v1505 = vsel %vm1488, %v1459, 0
      %v1508 = vsel %vm1488, %v1460, 0
      %v1511 = vsel %vm1488, %v1461, 0
      %v1514 = vsel %vm1488, %v1462, 0
      %v1517 = vsel %vm1488, %v1463, 0
      %v1520 = vsel %vm1488, %v1464, 0
      %v1523 = vsel %vm1488, %v1465, 0
      %v1526 = vsel %vm1488, %v1466, 0
      %v1529 = vsel %vm1488, %v1467, 0
      %v1532 = vsel %vm1488, %v1468, 0
      %v1535 = vsel %vm1488, %v1469, 0
      %v1538 = vsel %vm1488, %v1470, 0
      %v1541 = vsel %vm1488, %v1471, 0
      %v1544 = vsel %vm1488, %v1472, 0
      %v1547 = vsel %vm1488, %v1473, 0
      %v1550 = vsel %vm1488, %v1474, 0
      %v1553 = vsel %vm1488, %v1475, 0
      %v1556 = vsel %vm1488, %v1476, 0
      %v1559 = vsel %vm1488, %v1477, 0
      %v1562 = vsel %vm1488, %v1478, 0
      %v1565 = vsel %vm1488, %v1479, 0
      %v1568 = vsel %vm1488, %v1480, 0
      %v1571 = vsel %vm1488, %v1481, 0
      %v1574 = vsel %vm1488, %v1482, 0
      %v1577 = vsel %vm1488, %v1483, 0
      %v1580 = vsel %vm1488, %v1484, 0
      %v1583 = vsel %vm1488, %v1485, 0
      %vm1585 = vcmask 1043456
      %v1587 = vsel %vm1585, %v1487, 0
      %1589 = vmatprep.subr.mxu0 0.0
      %1590 = vmatpush1.msra.mxu0 %v1486
      %1591 = vmatprep.subr.mxu0 0.0
      %1592 = vmatpush1.msra.mxu0 %v1587
      %1593 = vmatprep.subr.mxu0 0.0
      %1594 = vmatpush1.msra.mxu0 0.0
      %1595 = vmatprep.subr.mxu0 0.0
      %1596 = vmatpush1.msra.mxu0 0.0
      %1597 = vmatprep.subr.mxu0 0.0
      %1598 = vmatpush1.msra.mxu0 0.0
      %1599 = vmatprep.subr.mxu0 0.0
      %1600 = vmatpush1.msra.mxu0 0.0
      %1601 = vmatprep.subr.mxu0 0.0
      %1602 = vmatpush1.msra.mxu0 0.0
      %1603 = vmatprep.subr.mxu0 0.0
      %1604 = vmatpush1.msra.mxu0 0.0
      %1605 = vmatprep.subr.mxu0 0.0
      %1606 = vmatpush1.msra.mxu0 0.0
      %1607 = vmatprep.subr.mxu0 0.0
      %1608 = vmatpush1.msra.mxu0 0.0
      %1609 = vmatprep.subr.mxu0 0.0
      %1610 = vmatpush1.msra.mxu0 0.0
      %1611 = vmatprep.subr.mxu0 0.0
      %1612 = vmatpush1.msra.mxu0 0.0
      %1613 = vmatprep.subr.mxu0 0.0
      %1614 = vmatpush1.msra.mxu0 0.0
      %1615 = vmatprep.subr.mxu0 0.0
      %1616 = vmatpush1.msra.mxu0 0.0
      %1617 = vmatprep.subr.mxu0 0.0
      %1618 = vmatpush1.msra.mxu0 0.0
      %1619 = vmatprep.subr.mxu0 0.0
      %1620 = vmatpush1.msra.mxu0 0.0
      %1621 = vmatprep.subr.mxu0 0.0
      %1622 = vmatpush1.msra.mxu0 0.0
      %1623 = vmatprep.subr.mxu0 0.0
      %1624 = vmatpush1.msra.mxu0 0.0
      %1625 = vmatprep.subr.mxu0 0.0
      %1626 = vmatpush1.msra.mxu0 0.0
      %1627 = vmatprep.subr.mxu0 0.0
      %1628 = vmatpush1.msra.mxu0 0.0
      %1629 = vmatprep.subr.mxu0 0.0
      %1630 = vmatpush1.msra.mxu0 0.0
      %1631 = vmatprep.subr.mxu0 0.0
      %1632 = vmatpush1.msra.mxu0 0.0
      %1633 = vmatprep.subr.mxu0 0.0
      %1634 = vmatpush1.msra.mxu0 0.0
      %1635 = vmatprep.subr.mxu0 0.0
      %1636 = vmatpush1.msra.mxu0 0.0
      %1637 = vmatprep.subr.mxu0 0.0
      %1638 = vmatpush1.msra.mxu0 0.0
      %1639 = vmatprep.subr.mxu0 0.0
      %1640 = vmatpush1.msra.mxu0 0.0
      %1641 = vmatprep.subr.mxu0 0.0
      %1642 = vmatpush1.msra.mxu0 0.0
      %1643 = vmatprep.subr.mxu0 0.0
      %1644 = vmatpush1.msra.mxu0 0.0
      %1645 = vmatprep.subr.mxu0 0.0
      %1646 = vmatpush1.msra.mxu0 0.0
      %1647 = vmatprep.subr.mxu0 0.0
      %1648 = vmatpush1.msra.mxu0 0.0
      %1649 = vmatprep.subr.mxu0 0.0
      %1650 = vmatpush1.msra.mxu0 0.0
      %1651 = vmatprep.subr.mxu0 0.0
      %1652 = vmatpush1.msra.mxu0 0.0
      %1653 = vmatprep.mubr.f32.mxu0 0.0
      %1654 = vmatmul.mubr.f32.gmra.mrb[0].mxu0 %v1490
      %v1655 = vpop.f32.mrb[0].mxu0
      %v1656 = vadd.f32 0.0, %v1655
      %v1657 = vpop.f32.mrb[0].mxu0
      %1658 = vmatprep.mubr.f32.mxu0 0.0
      %1659 = vmatmul.mubr.f32.gmra.mrb[0].mxu0 %v1493
      %v1660 = vpop.f32.mrb[0].mxu0
      %v1661 = vadd.f32 0.0, %v1660
      %v1662 = vpop.f32.mrb[0].mxu0
      %1663 = vmatprep.mubr.f32.mxu0 0.0
      %1664 = vmatmul.mubr.f32.gmra.mrb[0].mxu0 %v1496
      %v1665 = vpop.f32.mrb[0].mxu0
      %v1666 = vadd.f32 0.0, %v1665
      %v1667 = vpop.f32.mrb[0].mxu0
      %1668 = vmatprep.mubr.f32.mxu0 0.0
      %1669 = vmatmul.mubr.f32.gmra.mrb[0].mxu0 %v1499
      %v1670 = vpop.f32.mrb[0].mxu0
      %v1671 = vadd.f32 0.0, %v1670
      %v1672 = vpop.f32.mrb[0].mxu0
      %1673 = vmatprep.mubr.f32.mxu0 0.0
      %1674 = vmatmul.mubr.f32.gmra.mrb[0].mxu0 %v1502
      %v1675 = vpop.f32.mrb[0].mxu0
      %v1676 = vadd.f32 0.0, %v1675
      %v1677 = vpop.f32.mrb[0].mxu0
      %1678 = vmatprep.mubr.f32.mxu0 0.0
      %1679 = vmatmul.mubr.f32.gmra.mrb[0].mxu0 %v1505
      %v1680 = vpop.f32.mrb[0].mxu0
      %v1681 = vadd.f32 0.0, %v1680
      %v1682 = vpop.f32.mrb[0].mxu0
      %1683 = vmatprep.mubr.f32.mxu0 0.0
      %1684 = vmatmul.mubr.f32.gmra.mrb[0].mxu0 %v1508
      %v1685 = vpop.f32.mrb[0].mxu0
      %v1686 = vadd.f32 0.0, %v1685
      %v1687 = vpop.f32.mrb[0].mxu0
      %1688 = vmatprep.mubr.f32.mxu0 0.0
      %1689 = vmatmul.mubr.f32.gmra.mrb[0].mxu0 %v1511
      %v1690 = vpop.f32.mrb[0].mxu0
      %v1691 = vadd.f32 0.0, %v1690
      %v1692 = vpop.f32.mrb[0].mxu0
      %1693 = vmatprep.mubr.f32.mxu0 0.0
      %1694 = vmatmul.mubr.f32.gmra.mrb[0].mxu0 %v1514
      %v1695 = vpop.f32.mrb[0].mxu0
      %v1696 = vadd.f32 0.0, %v1695
      %v1697 = vpop.f32.mrb[0].mxu0
      %1698 = vmatprep.mubr.f32.mxu0 0.0
      %1699 = vmatmul.mubr.f32.gmra.mrb[0].mxu0 %v1517
      %v1700 = vpop.f32.mrb[0].mxu0
      %v1701 = vadd.f32 0.0, %v1700
      %v1702 = vpop.f32.mrb[0].mxu0
      %1703 = vmatprep.mubr.f32.mxu0 0.0
      %1704 = vmatmul.mubr.f32.gmra.mrb[0].mxu0 %v1520
      %v1705 = vpop.f32.mrb[0].mxu0
      %v1706 = vadd.f32 0.0, %v1705
      %v1707 = vpop.f32.mrb[0].mxu0
      %1708 = vmatprep.mubr.f32.mxu0 0.0
      %1709 = vmatmul.mubr.f32.gmra.mrb[0].mxu0 %v1523
      %v1710 = vpop.f32.mrb[0].mxu0
      %v1711 = vadd.f32 0.0, %v1710
      %v1712 = vpop.f32.mrb[0].mxu0
      %1713 = vmatprep.mubr.f32.mxu0 0.0
      %1714 = vmatmul.mubr.f32.gmra.mrb[0].mxu0 %v1526
      %v1715 = vpop.f32.mrb[0].mxu0
      %v1716 = vadd.f32 0.0, %v1715
      %v1717 = vpop.f32.mrb[0].mxu0
      %1718 = vmatprep.mubr.f32.mxu0 0.0
      %1719 = vmatmul.mubr.f32.gmra.mrb[0].mxu0 %v1529
      %v1720 = vpop.f32.mrb[0].mxu0
      %v1721 = vadd.f32 0.0, %v1720
      %v1722 = vpop.f32.mrb[0].mxu0
      %1723 = vmatprep.mubr.f32.mxu0 0.0
      %1724 = vmatmul.mubr.f32.gmra.mrb[0].mxu0 %v1532
      %v1725 = vpop.f32.mrb[0].mxu0
      %v1726 = vadd.f32 0.0, %v1725
      %v1727 = vpop.f32.mrb[0].mxu0
      %1728 = vmatprep.mubr.f32.mxu0 0.0
      %1729 = vmatmul.mubr.f32.gmra.mrb[0].mxu0 %v1535
      %v1730 = vpop.f32.mrb[0].mxu0
      %v1731 = vadd.f32 0.0, %v1730
      %v1732 = vpop.f32.mrb[0].mxu0
      %1733 = vmatprep.mubr.f32.mxu0 0.0
      %1734 = vmatmul.mubr.f32.gmra.mrb[0].mxu0 %v1538
      %v1735 = vpop.f32.mrb[0].mxu0
      %v1736 = vadd.f32 0.0, %v1735
      %v1737 = vpop.f32.mrb[0].mxu0
      %1738 = vmatprep.mubr.f32.mxu0 0.0
      %1739 = vmatmul.mubr.f32.gmra.mrb[0].mxu0 %v1541
      %v1740 = vpop.f32.mrb[0].mxu0
      %v1741 = vadd.f32 0.0, %v1740
      %v1742 = vpop.f32.mrb[0].mxu0
      %1743 = vmatprep.mubr.f32.mxu0 0.0
      %1744 = vmatmul.mubr.f32.gmra.mrb[0].mxu0 %v1544
      %v1745 = vpop.f32.mrb[0].mxu0
      %v1746 = vadd.f32 0.0, %v1745
      %v1747 = vpop.f32.mrb[0].mxu0
      %1748 = vmatprep.mubr.f32.mxu0 0.0
      %1749 = vmatmul.mubr.f32.gmra.mrb[0].mxu0 %v1547
      %v1750 = vpop.f32.mrb[0].mxu0
      %v1751 = vadd.f32 0.0, %v1750
      %v1752 = vpop.f32.mrb[0].mxu0
      %1753 = vmatprep.mubr.f32.mxu0 0.0
      %1754 = vmatmul.mubr.f32.gmra.mrb[0].mxu0 %v1550
      %v1755 = vpop.f32.mrb[0].mxu0
      %v1756 = vadd.f32 0.0, %v1755
      %v1757 = vpop.f32.mrb[0].mxu0
      %1758 = vmatprep.mubr.f32.mxu0 0.0
      %1759 = vmatmul.mubr.f32.gmra.mrb[0].mxu0 %v1553
      %v1760 = vpop.f32.mrb[0].mxu0
      %v1761 = vadd.f32 0.0, %v1760
      %v1762 = vpop.f32.mrb[0].mxu0
      %1763 = vmatprep.mubr.f32.mxu0 0.0
      %1764 = vmatmul.mubr.f32.gmra.mrb[0].mxu0 %v1556
      %v1765 = vpop.f32.mrb[0].mxu0
      %v1766 = vadd.f32 0.0, %v1765
      %v1767 = vpop.f32.mrb[0].mxu0
      %1768 = vmatprep.mubr.f32.mxu0 0.0
      %1769 = vmatmul.mubr.f32.gmra.mrb[0].mxu0 %v1559
      %v1770 = vpop.f32.mrb[0].mxu0
      %v1771 = vadd.f32 0.0, %v1770
      %v1772 = vpop.f32.mrb[0].mxu0
      %1773 = vmatprep.mubr.f32.mxu0 0.0
      %1774 = vmatmul.mubr.f32.gmra.mrb[0].mxu0 %v1562
      %v1775 = vpop.f32.mrb[0].mxu0
      %v1776 = vadd.f32 0.0, %v1775
      %v1777 = vpop.f32.mrb[0].mxu0
      %1778 = vmatprep.mubr.f32.mxu0 0.0
      %1779 = vmatmul.mubr.f32.gmra.mrb[0].mxu0 %v1565
      %v1780 = vpop.f32.mrb[0].mxu0
      %v1781 = vadd.f32 0.0, %v1780
      %v1782 = vpop.f32.mrb[0].mxu0
      %1783 = vmatprep.mubr.f32.mxu0 0.0
      %1784 = vmatmul.mubr.f32.gmra.mrb[0].mxu0 %v1568
      %v1785 = vpop.f32.mrb[0].mxu0
      %v1786 = vadd.f32 0.0, %v1785
      %v1787 = vpop.f32.mrb[0].mxu0
      %1788 = vmatprep.mubr.f32.mxu0 0.0
      %1789 = vmatmul.mubr.f32.gmra.mrb[0].mxu0 %v1571
      %v1790 = vpop.f32.mrb[0].mxu0
      %v1791 = vadd.f32 0.0, %v1790
      %v1792 = vpop.f32.mrb[0].mxu0
      %1793 = vmatprep.mubr.f32.mxu0 0.0
      %1794 = vmatmul.mubr.f32.gmra.mrb[0].mxu0 %v1574
      %v1795 = vpop.f32.mrb[0].mxu0
      %v1796 = vadd.f32 0.0, %v1795
      %v1797 = vpop.f32.mrb[0].mxu0
      %1798 = vmatprep.mubr.f32.mxu0 0.0
      %1799 = vmatmul.mubr.f32.gmra.mrb[0].mxu0 %v1577
      %v1800 = vpop.f32.mrb[0].mxu0
      %v1801 = vadd.f32 0.0, %v1800
      %v1802 = vpop.f32.mrb[0].mxu0
      %1803 = vmatprep.mubr.f32.mxu0 0.0
      %1804 = vmatmul.mubr.f32.gmra.mrb[0].mxu0 %v1580
      %v1805 = vpop.f32.mrb[0].mxu0
      %v1806 = vadd.f32 0.0, %v1805
      %v1807 = vpop.f32.mrb[0].mxu0
      %1808 = vmatprep.mubr.f32.mxu0 0.0
      %1809 = vmatmul.mubr.f32.gmra.mrb[0].mxu0 %v1583
      %v1810 = vpop.f32.mrb[0].mxu0
      %v1811 = vadd.f32 0.0, %v1810
      %v1812 = vpop.f32.mrb[0].mxu0
      %1813 = vdwg.mxu0
      %v1815 = vlaneseq
      %v1816 = vshrl.u32 %v1815, 7
      %v1817 = vsub.s32 0, %v1816
      %v1818 = vrot.slane %v1193, %v1817
      %v1820 = vadd.f32 %v1818, %v1656
      %v1821 = vadd.f32 %v1818, %v1661
      %v1822 = vadd.f32 %v1818, %v1666
      %v1823 = vadd.f32 %v1818, %v1671
      %v1824 = vadd.f32 %v1818, %v1676
      %v1825 = vadd.f32 %v1818, %v1681
      %v1826 = vadd.f32 %v1818, %v1686
      %v1827 = vadd.f32 %v1818, %v1691
      %v1828 = vadd.f32 %v1818, %v1696
      %v1829 = vadd.f32 %v1818, %v1701
      %v1830 = vadd.f32 %v1818, %v1706
      %v1831 = vadd.f32 %v1818, %v1711
      %v1832 = vadd.f32 %v1818, %v1716
      %v1833 = vadd.f32 %v1818, %v1721
      %v1834 = vadd.f32 %v1818, %v1726
      %v1835 = vadd.f32 %v1818, %v1731
      %v1836 = vadd.f32 %v1818, %v1736
      %v1837 = vadd.f32 %v1818, %v1741
      %v1838 = vadd.f32 %v1818, %v1746
      %v1839 = vadd.f32 %v1818, %v1751
      %v1840 = vadd.f32 %v1818, %v1756
      %v1841 = vadd.f32 %v1818, %v1761
      %v1842 = vadd.f32 %v1818, %v1766
      %v1843 = vadd.f32 %v1818, %v1771
      %v1844 = vadd.f32 %v1818, %v1776
      %v1845 = vadd.f32 %v1818, %v1781
      %v1846 = vadd.f32 %v1818, %v1786
      %v1847 = vadd.f32 %v1818, %v1791
      %v1848 = vadd.f32 %v1818, %v1796
      %v1849 = vadd.f32 %v1818, %v1801
      %v1850 = vadd.f32 %v1818, %v1806
      %v1851 = vadd.f32 %v1818, %v1811
      %1868 = vrot.lane.b32.xlu0 %v1144, 4
      %v1869 = vpop.permute.xlu0 %1868
      %1870 = vrot.lane.b32.xlu0 %v1147, 4
      %v1871 = vpop.permute.xlu0 %1870
      %1872 = vrot.lane.b32.xlu0 %v1150, 4
      %v1873 = vpop.permute.xlu0 %1872
      %1874 = vrot.lane.b32.xlu0 %v1153, 4
      %v1875 = vpop.permute.xlu0 %1874
      %1876 = vrot.lane.b32.xlu0 %v1156, 4
      %v1877 = vpop.permute.xlu0 %1876
      %1878 = vrot.lane.b32.xlu0 %v1159, 4
      %v1879 = vpop.permute.xlu0 %1878
      %1880 = vrot.lane.b32.xlu0 %v1162, 4
      %v1881 = vpop.permute.xlu0 %1880
      %1882 = vrot.lane.b32.xlu0 %v1165, 4
      %v1883 = vpop.permute.xlu0 %1882
      %1884 = vrot.lane.b32.xlu0 %v1168, 4
      %v1885 = vpop.permute.xlu0 %1884
      %1886 = vrot.lane.b32.xlu0 %v1171, 4
      %v1887 = vpop.permute.xlu0 %1886
      %1888 = vrot.lane.b32.xlu0 %v1174, 4
      %v1889 = vpop.permute.xlu0 %1888
      %1890 = vrot.lane.b32.xlu0 %v1177, 4
      %v1891 = vpop.permute.xlu0 %1890
      %1892 = vrot.lane.b32.xlu0 %v1180, 4
      %v1893 = vpop.permute.xlu0 %1892
      %1894 = vrot.lane.b32.xlu0 %v1183, 4
      %v1895 = vpop.permute.xlu0 %1894
      %1896 = vrot.lane.b32.xlu0 %v1186, 4
      %v1897 = vpop.permute.xlu0 %1896
      %1898 = vrot.lane.b32.xlu0 %v1189, 4
      %v1899 = vpop.permute.xlu0 %1898
      %1917 = vrot.lane.b32.xlu0 %v1147, 8
      %v1918 = vpop.permute.xlu0 %1917
      %1919 = vrot.lane.b32.xlu0 %v1150, 8
      %v1920 = vpop.permute.xlu0 %1919
      %1921 = vrot.lane.b32.xlu0 %v1153, 8
      %v1922 = vpop.permute.xlu0 %1921
      %1923 = vrot.lane.b32.xlu0 %v1156, 8
      %v1924 = vpop.permute.xlu0 %1923
      %1925 = vrot.lane.b32.xlu0 %v1159, 8
      %v1926 = vpop.permute.xlu0 %1925
      %1927 = vrot.lane.b32.xlu0 %v1162, 8
      %v1928 = vpop.permute.xlu0 %1927
      %1929 = vrot.lane.b32.xlu0 %v1165, 8
      %v1930 = vpop.permute.xlu0 %1929
      %1931 = vrot.lane.b32.xlu0 %v1168, 8
      %v1932 = vpop.permute.xlu0 %1931
      %1933 = vrot.lane.b32.xlu0 %v1171, 8
      %v1934 = vpop.permute.xlu0 %1933
      %1935 = vrot.lane.b32.xlu0 %v1174, 8
      %v1936 = vpop.permute.xlu0 %1935
      %1937 = vrot.lane.b32.xlu0 %v1177, 8
      %v1938 = vpop.permute.xlu0 %1937
      %1939 = vrot.lane.b32.xlu0 %v1180, 8
      %v1940 = vpop.permute.xlu0 %1939
      %1941 = vrot.lane.b32.xlu0 %v1183, 8
      %v1942 = vpop.permute.xlu0 %1941
      %1943 = vrot.lane.b32.xlu0 %v1186, 8
      %v1944 = vpop.permute.xlu0 %1943
      %1945 = vrot.lane.b32.xlu0 %v1189, 8
      %v1946 = vpop.permute.xlu0 %1945
      %1947 = vrot.lane.b32.xlu0 %v1192, 8
      %v1948 = vpop.permute.xlu0 %1947
      %v1965 = vsel %vm1420, %v1141, %v1869
      %v1966 = vsel %vm1420, %v1144, %v1871
      %v1967 = vsel %vm1420, %v1147, %v1873
      %v1968 = vsel %vm1420, %v1150, %v1875
      %v1969 = vsel %vm1420, %v1153, %v1877
      %v1970 = vsel %vm1420, %v1156, %v1879
      %v1971 = vsel %vm1420, %v1159, %v1881
      %v1972 = vsel %vm1420, %v1162, %v1883
      %v1973 = vsel %vm1420, %v1165, %v1885
      %v1974 = vsel %vm1420, %v1168, %v1887
      %v1975 = vsel %vm1420, %v1171, %v1889
      %v1976 = vsel %vm1420, %v1174, %v1891
      %v1977 = vsel %vm1420, %v1177, %v1893
      %v1978 = vsel %vm1420, %v1180, %v1895
      %v1979 = vsel %vm1420, %v1183, %v1897
      %v1980 = vsel %vm1420, %v1186, %v1899
      %v1981 = vsel %vm1453, %v1965, %v1918
      %v1982 = vsel %vm1453, %v1966, %v1920
      %v1983 = vsel %vm1453, %v1967, %v1922
      %v1984 = vsel %vm1453, %v1968, %v1924
      %v1985 = vsel %vm1453, %v1969, %v1926
      %v1986 = vsel %vm1453, %v1970, %v1928
      %v1987 = vsel %vm1453, %v1971, %v1930
      %v1988 = vsel %vm1453, %v1972, %v1932
      %v1989 = vsel %vm1453, %v1973, %v1934
      %v1990 = vsel %vm1453, %v1974, %v1936
      %v1991 = vsel %vm1453, %v1975, %v1938
      %v1992 = vsel %vm1453, %v1976, %v1940
      %v1993 = vsel %vm1453, %v1977, %v1942
      %v1994 = vsel %vm1453, %v1978, %v1944
      %v1995 = vsel %vm1453, %v1979, %v1946
      %v1996 = vsel %vm1453, %v1980, %v1948
      %vm2013 = vcmask 1046528
      %v2014 = vrot.slane %v1454, 1
      %v2015 = vrot.slane %v1455, 1
      %v2016 = vsel %vm2013, %v2014, %v2015
      %v2017 = vrot.slane %v1981, 1
      %v2018 = vsel %vm2013, %v2015, %v2017
      %v2019 = vrot.slane %v1456, 1
      %v2020 = vrot.slane %v1457, 1
      %v2021 = vsel %vm2013, %v2019, %v2020
      %v2022 = vrot.slane %v1982, 1
      %v2023 = vsel %vm2013, %v2020, %v2022
      %v2024 = vrot.slane %v1458, 1
      %v2025 = vrot.slane %v1459, 1
      %v2026 = vsel %vm2013, %v2024, %v2025
      %v2027 = vrot.slane %v1983, 1
      %v2028 = vsel %vm2013, %v2025, %v2027
      %v2029 = vrot.slane %v1460, 1
      %v2030 = vrot.slane %v1461, 1
      %v2031 = vsel %vm2013, %v2029, %v2030
      %v2032 = vrot.slane %v1984, 1
      %v2033 = vsel %vm2013, %v2030, %v2032
      %v2034 = vrot.slane %v1462, 1
      %v2035 = vrot.slane %v1463, 1
      %v2036 = vsel %vm2013, %v2034, %v2035
      %v2037 = vrot.slane %v1985, 1
      %v2038 = vsel %vm2013, %v2035, %v2037
      %v2039 = vrot.slane %v1464, 1
      %v2040 = vrot.slane %v1465, 1
      %v2041 = vsel %vm2013, %v2039, %v2040
      %v2042 = vrot.slane %v1986, 1
      %v2043 = vsel %vm2013, %v2040, %v2042
      %v2044 = vrot.slane %v1466, 1
      %v2045 = vrot.slane %v1467, 1
      %v2046 = vsel %vm2013, %v2044, %v2045
      %v2047 = vrot.slane %v1987, 1
      %v2048 = vsel %vm2013, %v2045, %v2047
      %v2049 = vrot.slane %v1468, 1
      %v2050 = vrot.slane %v1469, 1
      %v2051 = vsel %vm2013, %v2049, %v2050
      %v2052 = vrot.slane %v1988, 1
      %v2053 = vsel %vm2013, %v2050, %v2052
      %v2054 = vrot.slane %v1470, 1
      %v2055 = vrot.slane %v1471, 1
      %v2056 = vsel %vm2013, %v2054, %v2055
      %v2057 = vrot.slane %v1989, 1
      %v2058 = vsel %vm2013, %v2055, %v2057
      %v2059 = vrot.slane %v1472, 1
      %v2060 = vrot.slane %v1473, 1
      %v2061 = vsel %vm2013, %v2059, %v2060
      %v2062 = vrot.slane %v1990, 1
      %v2063 = vsel %vm2013, %v2060, %v2062
      %v2064 = vrot.slane %v1474, 1
      %v2065 = vrot.slane %v1475, 1
      %v2066 = vsel %vm2013, %v2064, %v2065
      %v2067 = vrot.slane %v1991, 1
      %v2068 = vsel %vm2013, %v2065, %v2067
      %v2069 = vrot.slane %v1476, 1
      %v2070 = vrot.slane %v1477, 1
      %v2071 = vsel %vm2013, %v2069, %v2070
      %v2072 = vrot.slane %v1992, 1
      %v2073 = vsel %vm2013, %v2070, %v2072
      %v2074 = vrot.slane %v1478, 1
      %v2075 = vrot.slane %v1479, 1
      %v2076 = vsel %vm2013, %v2074, %v2075
      %v2077 = vrot.slane %v1993, 1
      %v2078 = vsel %vm2013, %v2075, %v2077
      %v2079 = vrot.slane %v1480, 1
      %v2080 = vrot.slane %v1481, 1
      %v2081 = vsel %vm2013, %v2079, %v2080
      %v2082 = vrot.slane %v1994, 1
      %v2083 = vsel %vm2013, %v2080, %v2082
      %v2084 = vrot.slane %v1482, 1
      %v2085 = vrot.slane %v1483, 1
      %v2086 = vsel %vm2013, %v2084, %v2085
      %v2087 = vrot.slane %v1995, 1
      %v2088 = vsel %vm2013, %v2085, %v2087
      %v2089 = vrot.slane %v1484, 1
      %v2090 = vrot.slane %v1485, 1
      %v2091 = vsel %vm2013, %v2089, %v2090
      %v2092 = vrot.slane %v1996, 1
      %v2093 = vsel %vm2013, %v2090, %v2092
      %s2094 = scalar_lea.vmem %s337, 16
      %v2095 = vld [vmem:[%s2094] sm:$0xff]
      %v2096 = vld [vmem:[%s2094 + $0x8] sm:$0xf]
      %v2097 = vsel %vm1488, %v2016, 0
      %v2099 = vsel %vm1488, %v2018, 0
      %v2101 = vsel %vm1488, %v2021, 0
      %v2103 = vsel %vm1488, %v2023, 0
      %v2105 = vsel %vm1488, %v2026, 0
      %v2107 = vsel %vm1488, %v2028, 0
      %v2109 = vsel %vm1488, %v2031, 0
      %v2111 = vsel %vm1488, %v2033, 0
      %v2113 = vsel %vm1488, %v2036, 0
      %v2115 = vsel %vm1488, %v2038, 0
      %v2117 = vsel %vm1488, %v2041, 0
      %v2119 = vsel %vm1488, %v2043, 0
      %v2121 = vsel %vm1488, %v2046, 0
      %v2123 = vsel %vm1488, %v2048, 0
      %v2125 = vsel %vm1488, %v2051, 0
      %v2127 = vsel %vm1488, %v2053, 0
      %v2129 = vsel %vm1488, %v2056, 0
      %v2131 = vsel %vm1488, %v2058, 0
      %v2133 = vsel %vm1488, %v2061, 0
      %v2135 = vsel %vm1488, %v2063, 0
      %v2137 = vsel %vm1488, %v2066, 0
      %v2139 = vsel %vm1488, %v2068, 0
      %v2141 = vsel %vm1488, %v2071, 0
      %v2143 = vsel %vm1488, %v2073, 0
      %v2145 = vsel %vm1488, %v2076, 0
      %v2147 = vsel %vm1488, %v2078, 0
      %v2149 = vsel %vm1488, %v2081, 0
      %v2151 = vsel %vm1488, %v2083, 0
      %v2153 = vsel %vm1488, %v2086, 0
      %v2155 = vsel %vm1488, %v2088, 0
      %v2157 = vsel %vm1488, %v2091, 0
      %v2159 = vsel %vm1488, %v2093, 0
      %v2162 = vsel %vm1585, %v2096, 0
      %2164 = vmatprep.subr.mxu0 0.0
      %2165 = vmatpush1.msra.mxu0 %v2095
      %2166 = vmatprep.subr.mxu0 0.0
      %2167 = vmatpush1.msra.mxu0 %v2162
      %2168 = vmatprep.subr.mxu0 0.0
      %2169 = vmatpush1.msra.mxu0 0.0
      %2170 = vmatprep.subr.mxu0 0.0
      %2171 = vmatpush1.msra.mxu0 0.0
      %2172 = vmatprep.subr.mxu0 0.0
      %2173 = vmatpush1.msra.mxu0 0.0
      %2174 = vmatprep.subr.mxu0 0.0
      %2175 = vmatpush1.msra.mxu0 0.0
      %2176 = vmatprep.subr.mxu0 0.0
      %2177 = vmatpush1.msra.mxu0 0.0
      %2178 = vmatprep.subr.mxu0 0.0
      %2179 = vmatpush1.msra.mxu0 0.0
      %2180 = vmatprep.subr.mxu0 0.0
      %2181 = vmatpush1.msra.mxu0 0.0
      %2182 = vmatprep.subr.mxu0 0.0
      %2183 = vmatpush1.msra.mxu0 0.0
      %2184 = vmatprep.subr.mxu0 0.0
      %2185 = vmatpush1.msra.mxu0 0.0
      %2186 = vmatprep.subr.mxu0 0.0
      %2187 = vmatpush1.msra.mxu0 0.0
      %2188 = vmatprep.subr.mxu0 0.0
      %2189 = vmatpush1.msra.mxu0 0.0
      %2190 = vmatprep.subr.mxu0 0.0
      %2191 = vmatpush1.msra.mxu0 0.0
      %2192 = vmatprep.subr.mxu0 0.0
      %2193 = vmatpush1.msra.mxu0 0.0
      %2194 = vmatprep.subr.mxu0 0.0
      %2195 = vmatpush1.msra.mxu0 0.0
      %2196 = vmatprep.subr.mxu0 0.0
      %2197 = vmatpush1.msra.mxu0 0.0
      %2198 = vmatprep.subr.mxu0 0.0
      %2199 = vmatpush1.msra.mxu0 0.0
      %2200 = vmatprep.subr.mxu0 0.0
      %2201 = vmatpush1.msra.mxu0 0.0
      %2202 = vmatprep.subr.mxu0 0.0
      %2203 = vmatpush1.msra.mxu0 0.0
      %2204 = vmatprep.subr.mxu0 0.0
      %2205 = vmatpush1.msra.mxu0 0.0
      %2206 = vmatprep.subr.mxu0 0.0
      %2207 = vmatpush1.msra.mxu0 0.0
      %2208 = vmatprep.subr.mxu0 0.0
      %2209 = vmatpush1.msra.mxu0 0.0
      %2210 = vmatprep.subr.mxu0 0.0
      %2211 = vmatpush1.msra.mxu0 0.0
      %2212 = vmatprep.subr.mxu0 0.0
      %2213 = vmatpush1.msra.mxu0 0.0
      %2214 = vmatprep.subr.mxu0 0.0
      %2215 = vmatpush1.msra.mxu0 0.0
      %2216 = vmatprep.subr.mxu0 0.0
      %2217 = vmatpush1.msra.mxu0 0.0
      %2218 = vmatprep.subr.mxu0 0.0
      %2219 = vmatpush1.msra.mxu0 0.0
      %2220 = vmatprep.subr.mxu0 0.0
      %2221 = vmatpush1.msra.mxu0 0.0
      %2222 = vmatprep.subr.mxu0 0.0
      %2223 = vmatpush1.msra.mxu0 0.0
      %2224 = vmatprep.subr.mxu0 0.0
      %2225 = vmatpush1.msra.mxu0 0.0
      %2226 = vmatprep.subr.mxu0 0.0
      %2227 = vmatpush1.msra.mxu0 0.0
      %2228 = vmatprep.mubr.f32.mxu0 0.0
      %2229 = vmatmul.mubr.f32.gmra.mrb[0].mxu0 %v2097
      %v2230 = vpop.f32.mrb[0].mxu0
      %v2231 = vadd.f32 0.0, %v2230
      %v2232 = vpop.f32.mrb[0].mxu0
      %2233 = vmatprep.mubr.f32.mxu0 0.0
      %2234 = vmatmul.mubr.f32.gmra.mrb[0].mxu0 %v2099
      %v2235 = vpop.f32.mrb[0].mxu0
      %v2236 = vadd.f32 0.0, %v2235
      %v2237 = vpop.f32.mrb[0].mxu0
      %2238 = vmatprep.mubr.f32.mxu0 0.0
      %2239 = vmatmul.mubr.f32.gmra.mrb[0].mxu0 %v2101
      %v2240 = vpop.f32.mrb[0].mxu0
      %v2241 = vadd.f32 0.0, %v2240
      %v2242 = vpop.f32.mrb[0].mxu0
      %2243 = vmatprep.mubr.f32.mxu0 0.0
      %2244 = vmatmul.mubr.f32.gmra.mrb[0].mxu0 %v2103
      %v2245 = vpop.f32.mrb[0].mxu0
      %v2246 = vadd.f32 0.0, %v2245
      %v2247 = vpop.f32.mrb[0].mxu0
      %2248 = vmatprep.mubr.f32.mxu0 0.0
      %2249 = vmatmul.mubr.f32.gmra.mrb[0].mxu0 %v2105
      %v2250 = vpop.f32.mrb[0].mxu0
      %v2251 = vadd.f32 0.0, %v2250
      %v2252 = vpop.f32.mrb[0].mxu0
      %2253 = vmatprep.mubr.f32.mxu0 0.0
      %2254 = vmatmul.mubr.f32.gmra.mrb[0].mxu0 %v2107
      %v2255 = vpop.f32.mrb[0].mxu0
      %v2256 = vadd.f32 0.0, %v2255
      %v2257 = vpop.f32.mrb[0].mxu0
      %2258 = vmatprep.mubr.f32.mxu0 0.0
      %2259 = vmatmul.mubr.f32.gmra.mrb[0].mxu0 %v2109
      %v2260 = vpop.f32.mrb[0].mxu0
      %v2261 = vadd.f32 0.0, %v2260
      %v2262 = vpop.f32.mrb[0].mxu0
      %2263 = vmatprep.mubr.f32.mxu0 0.0
      %2264 = vmatmul.mubr.f32.gmra.mrb[0].mxu0 %v2111
      %v2265 = vpop.f32.mrb[0].mxu0
      %v2266 = vadd.f32 0.0, %v2265
      %v2267 = vpop.f32.mrb[0].mxu0
      %2268 = vmatprep.mubr.f32.mxu0 0.0
      %2269 = vmatmul.mubr.f32.gmra.mrb[0].mxu0 %v2113
      %v2270 = vpop.f32.mrb[0].mxu0
      %v2271 = vadd.f32 0.0, %v2270
      %v2272 = vpop.f32.mrb[0].mxu0
      %2273 = vmatprep.mubr.f32.mxu0 0.0
      %2274 = vmatmul.mubr.f32.gmra.mrb[0].mxu0 %v2115
      %v2275 = vpop.f32.mrb[0].mxu0
      %v2276 = vadd.f32 0.0, %v2275
      %v2277 = vpop.f32.mrb[0].mxu0
      %2278 = vmatprep.mubr.f32.mxu0 0.0
      %2279 = vmatmul.mubr.f32.gmra.mrb[0].mxu0 %v2117
      %v2280 = vpop.f32.mrb[0].mxu0
      %v2281 = vadd.f32 0.0, %v2280
      %v2282 = vpop.f32.mrb[0].mxu0
      %2283 = vmatprep.mubr.f32.mxu0 0.0
      %2284 = vmatmul.mubr.f32.gmra.mrb[0].mxu0 %v2119
      %v2285 = vpop.f32.mrb[0].mxu0
      %v2286 = vadd.f32 0.0, %v2285
      %v2287 = vpop.f32.mrb[0].mxu0
      %2288 = vmatprep.mubr.f32.mxu0 0.0
      %2289 = vmatmul.mubr.f32.gmra.mrb[0].mxu0 %v2121
      %v2290 = vpop.f32.mrb[0].mxu0
      %v2291 = vadd.f32 0.0, %v2290
      %v2292 = vpop.f32.mrb[0].mxu0
      %2293 = vmatprep.mubr.f32.mxu0 0.0
      %2294 = vmatmul.mubr.f32.gmra.mrb[0].mxu0 %v2123
      %v2295 = vpop.f32.mrb[0].mxu0
      %v2296 = vadd.f32 0.0, %v2295
      %v2297 = vpop.f32.mrb[0].mxu0
      %2298 = vmatprep.mubr.f32.mxu0 0.0
      %2299 = vmatmul.mubr.f32.gmra.mrb[0].mxu0 %v2125
      %v2300 = vpop.f32.mrb[0].mxu0
      %v2301 = vadd.f32 0.0, %v2300
      %v2302 = vpop.f32.mrb[0].mxu0
      %2303 = vmatprep.mubr.f32.mxu0 0.0
      %2304 = vmatmul.mubr.f32.gmra.mrb[0].mxu0 %v2127
      %v2305 = vpop.f32.mrb[0].mxu0
      %v2306 = vadd.f32 0.0, %v2305
      %v2307 = vpop.f32.mrb[0].mxu0
      %2308 = vmatprep.mubr.f32.mxu0 0.0
      %2309 = vmatmul.mubr.f32.gmra.mrb[0].mxu0 %v2129
      %v2310 = vpop.f32.mrb[0].mxu0
      %v2311 = vadd.f32 0.0, %v2310
      %v2312 = vpop.f32.mrb[0].mxu0
      %2313 = vmatprep.mubr.f32.mxu0 0.0
      %2314 = vmatmul.mubr.f32.gmra.mrb[0].mxu0 %v2131
      %v2315 = vpop.f32.mrb[0].mxu0
      %v2316 = vadd.f32 0.0, %v2315
      %v2317 = vpop.f32.mrb[0].mxu0
      %2318 = vmatprep.mubr.f32.mxu0 0.0
      %2319 = vmatmul.mubr.f32.gmra.mrb[0].mxu0 %v2133
      %v2320 = vpop.f32.mrb[0].mxu0
      %v2321 = vadd.f32 0.0, %v2320
      %v2322 = vpop.f32.mrb[0].mxu0
      %2323 = vmatprep.mubr.f32.mxu0 0.0
      %2324 = vmatmul.mubr.f32.gmra.mrb[0].mxu0 %v2135
      %v2325 = vpop.f32.mrb[0].mxu0
      %v2326 = vadd.f32 0.0, %v2325
      %v2327 = vpop.f32.mrb[0].mxu0
      %2328 = vmatprep.mubr.f32.mxu0 0.0
      %2329 = vmatmul.mubr.f32.gmra.mrb[0].mxu0 %v2137
      %v2330 = vpop.f32.mrb[0].mxu0
      %v2331 = vadd.f32 0.0, %v2330
      %v2332 = vpop.f32.mrb[0].mxu0
      %2333 = vmatprep.mubr.f32.mxu0 0.0
      %2334 = vmatmul.mubr.f32.gmra.mrb[0].mxu0 %v2139
      %v2335 = vpop.f32.mrb[0].mxu0
      %v2336 = vadd.f32 0.0, %v2335
      %v2337 = vpop.f32.mrb[0].mxu0
      %2338 = vmatprep.mubr.f32.mxu0 0.0
      %2339 = vmatmul.mubr.f32.gmra.mrb[0].mxu0 %v2141
      %v2340 = vpop.f32.mrb[0].mxu0
      %v2341 = vadd.f32 0.0, %v2340
      %v2342 = vpop.f32.mrb[0].mxu0
      %2343 = vmatprep.mubr.f32.mxu0 0.0
      %2344 = vmatmul.mubr.f32.gmra.mrb[0].mxu0 %v2143
      %v2345 = vpop.f32.mrb[0].mxu0
      %v2346 = vadd.f32 0.0, %v2345
      %v2347 = vpop.f32.mrb[0].mxu0
      %2348 = vmatprep.mubr.f32.mxu0 0.0
      %2349 = vmatmul.mubr.f32.gmra.mrb[0].mxu0 %v2145
      %v2350 = vpop.f32.mrb[0].mxu0
      %v2351 = vadd.f32 0.0, %v2350
      %v2352 = vpop.f32.mrb[0].mxu0
      %2353 = vmatprep.mubr.f32.mxu0 0.0
      %2354 = vmatmul.mubr.f32.gmra.mrb[0].mxu0 %v2147
      %v2355 = vpop.f32.mrb[0].mxu0
      %v2356 = vadd.f32 0.0, %v2355
      %v2357 = vpop.f32.mrb[0].mxu0
      %2358 = vmatprep.mubr.f32.mxu0 0.0
      %2359 = vmatmul.mubr.f32.gmra.mrb[0].mxu0 %v2149
      %v2360 = vpop.f32.mrb[0].mxu0
      %v2361 = vadd.f32 0.0, %v2360
      %v2362 = vpop.f32.mrb[0].mxu0
      %2363 = vmatprep.mubr.f32.mxu0 0.0
      %2364 = vmatmul.mubr.f32.gmra.mrb[0].mxu0 %v2151
      %v2365 = vpop.f32.mrb[0].mxu0
      %v2366 = vadd.f32 0.0, %v2365
      %v2367 = vpop.f32.mrb[0].mxu0
      %2368 = vmatprep.mubr.f32.mxu0 0.0
      %2369 = vmatmul.mubr.f32.gmra.mrb[0].mxu0 %v2153
      %v2370 = vpop.f32.mrb[0].mxu0
      %v2371 = vadd.f32 0.0, %v2370
      %v2372 = vpop.f32.mrb[0].mxu0
      %2373 = vmatprep.mubr.f32.mxu0 0.0
      %2374 = vmatmul.mubr.f32.gmra.mrb[0].mxu0 %v2155
      %v2375 = vpop.f32.mrb[0].mxu0
      %v2376 = vadd.f32 0.0, %v2375
      %v2377 = vpop.f32.mrb[0].mxu0
      %2378 = vmatprep.mubr.f32.mxu0 0.0
      %2379 = vmatmul.mubr.f32.gmra.mrb[0].mxu0 %v2157
      %v2380 = vpop.f32.mrb[0].mxu0
      %v2381 = vadd.f32 0.0, %v2380
      %v2382 = vpop.f32.mrb[0].mxu0
      %2383 = vmatprep.mubr.f32.mxu0 0.0
      %2384 = vmatmul.mubr.f32.gmra.mrb[0].mxu0 %v2159
      %v2385 = vpop.f32.mrb[0].mxu0
      %v2386 = vadd.f32 0.0, %v2385
      %v2387 = vpop.f32.mrb[0].mxu0
      %2388 = vdwg.mxu0
      %v2389 = vadd.f32 %v1820, %v2231
      %v2390 = vadd.f32 %v1821, %v2236
      %v2391 = vadd.f32 %v1822, %v2241
      %v2392 = vadd.f32 %v1823, %v2246
      %v2393 = vadd.f32 %v1824, %v2251
      %v2394 = vadd.f32 %v1825, %v2256
      %v2395 = vadd.f32 %v1826, %v2261
      %v2396 = vadd.f32 %v1827, %v2266
      %v2397 = vadd.f32 %v1828, %v2271
      %v2398 = vadd.f32 %v1829, %v2276
      %v2399 = vadd.f32 %v1830, %v2281
      %v2400 = vadd.f32 %v1831, %v2286
      %v2401 = vadd.f32 %v1832, %v2291
      %v2402 = vadd.f32 %v1833, %v2296
      %v2403 = vadd.f32 %v1834, %v2301
      %v2404 = vadd.f32 %v1835, %v2306
      %v2405 = vadd.f32 %v1836, %v2311
      %v2406 = vadd.f32 %v1837, %v2316
      %v2407 = vadd.f32 %v1838, %v2321
      %v2408 = vadd.f32 %v1839, %v2326
      %v2409 = vadd.f32 %v1840, %v2331
      %v2410 = vadd.f32 %v1841, %v2336
      %v2411 = vadd.f32 %v1842, %v2341
      %v2412 = vadd.f32 %v1843, %v2346
      %v2413 = vadd.f32 %v1844, %v2351
      %v2414 = vadd.f32 %v1845, %v2356
      %v2415 = vadd.f32 %v1846, %v2361
      %v2416 = vadd.f32 %v1847, %v2366
      %v2417 = vadd.f32 %v1848, %v2371
      %v2418 = vadd.f32 %v1849, %v2376
      %v2419 = vadd.f32 %v1850, %v2381
      %v2420 = vadd.f32 %v1851, %v2386
      %vm2421 = vcmask 1045504
      %v2422 = vrot.slane %v1454, 2
      %v2423 = vrot.slane %v1455, 2
      %v2424 = vsel %vm2421, %v2422, %v2423
      %v2425 = vrot.slane %v1981, 2
      %v2426 = vsel %vm2421, %v2423, %v2425
      %v2427 = vrot.slane %v1456, 2
      %v2428 = vrot.slane %v1457, 2
      %v2429 = vsel %vm2421, %v2427, %v2428
      %v2430 = vrot.slane %v1982, 2
      %v2431 = vsel %vm2421, %v2428, %v2430
      %v2432 = vrot.slane %v1458, 2
      %v2433 = vrot.slane %v1459, 2
      %v2434 = vsel %vm2421, %v2432, %v2433
      %v2435 = vrot.slane %v1983, 2
      %v2436 = vsel %vm2421, %v2433, %v2435
      %v2437 = vrot.slane %v1460, 2
      %v2438 = vrot.slane %v1461, 2
      %v2439 = vsel %vm2421, %v2437, %v2438
      %v2440 = vrot.slane %v1984, 2
      %v2441 = vsel %vm2421, %v2438, %v2440
      %v2442 = vrot.slane %v1462, 2
      %v2443 = vrot.slane %v1463, 2
      %v2444 = vsel %vm2421, %v2442, %v2443
      %v2445 = vrot.slane %v1985, 2
      %v2446 = vsel %vm2421, %v2443, %v2445
      %v2447 = vrot.slane %v1464, 2
      %v2448 = vrot.slane %v1465, 2
      %v2449 = vsel %vm2421, %v2447, %v2448
      %v2450 = vrot.slane %v1986, 2
      %v2451 = vsel %vm2421, %v2448, %v2450
      %v2452 = vrot.slane %v1466, 2
      %v2453 = vrot.slane %v1467, 2
      %v2454 = vsel %vm2421, %v2452, %v2453
      %v2455 = vrot.slane %v1987, 2
      %v2456 = vsel %vm2421, %v2453, %v2455
      %v2457 = vrot.slane %v1468, 2
      %v2458 = vrot.slane %v1469, 2
      %v2459 = vsel %vm2421, %v2457, %v2458
      %v2460 = vrot.slane %v1988, 2
      %v2461 = vsel %vm2421, %v2458, %v2460
      %v2462 = vrot.slane %v1470, 2
      %v2463 = vrot.slane %v1471, 2
      %v2464 = vsel %vm2421, %v2462, %v2463
      %v2465 = vrot.slane %v1989, 2
      %v2466 = vsel %vm2421, %v2463, %v2465
      %v2467 = vrot.slane %v1472, 2
      %v2468 = vrot.slane %v1473, 2
      %v2469 = vsel %vm2421, %v2467, %v2468
      %v2470 = vrot.slane %v1990, 2
      %v2471 = vsel %vm2421, %v2468, %v2470
      %v2472 = vrot.slane %v1474, 2
      %v2473 = vrot.slane %v1475, 2
      %v2474 = vsel %vm2421, %v2472, %v2473
      %v2475 = vrot.slane %v1991, 2
      %v2476 = vsel %vm2421, %v2473, %v2475
      %v2477 = vrot.slane %v1476, 2
      %v2478 = vrot.slane %v1477, 2
      %v2479 = vsel %vm2421, %v2477, %v2478
      %v2480 = vrot.slane %v1992, 2
      %v2481 = vsel %vm2421, %v2478, %v2480
      %v2482 = vrot.slane %v1478, 2
      %v2483 = vrot.slane %v1479, 2
      %v2484 = vsel %vm2421, %v2482, %v2483
      %v2485 = vrot.slane %v1993, 2
      %v2486 = vsel %vm2421, %v2483, %v2485
      %v2487 = vrot.slane %v1480, 2
      %v2488 = vrot.slane %v1481, 2
      %v2489 = vsel %vm2421, %v2487, %v2488
      %v2490 = vrot.slane %v1994, 2
      %v2491 = vsel %vm2421, %v2488, %v2490
      %v2492 = vrot.slane %v1482, 2
      %v2493 = vrot.slane %v1483, 2
      %v2494 = vsel %vm2421, %v2492, %v2493
      %v2495 = vrot.slane %v1995, 2
      %v2496 = vsel %vm2421, %v2493, %v2495
      %v2497 = vrot.slane %v1484, 2
      %v2498 = vrot.slane %v1485, 2
      %v2499 = vsel %vm2421, %v2497, %v2498
      %v2500 = vrot.slane %v1996, 2
      %v2501 = vsel %vm2421, %v2498, %v2500
      %s2502 = scalar_lea.vmem %s337, 32
      %v2503 = vld [vmem:[%s2502] sm:$0xff]
      %v2504 = vld [vmem:[%s2502 + $0x8] sm:$0xf]
      %v2505 = vsel %vm1488, %v2424, 0
      %v2507 = vsel %vm1488, %v2426, 0
      %v2509 = vsel %vm1488, %v2429, 0
      %v2511 = vsel %vm1488, %v2431, 0
      %v2513 = vsel %vm1488, %v2434, 0
      %v2515 = vsel %vm1488, %v2436, 0
      %v2517 = vsel %vm1488, %v2439, 0
      %v2519 = vsel %vm1488, %v2441, 0
      %v2521 = vsel %vm1488, %v2444, 0
      %v2523 = vsel %vm1488, %v2446, 0
      %v2525 = vsel %vm1488, %v2449, 0
      %v2527 = vsel %vm1488, %v2451, 0
      %v2529 = vsel %vm1488, %v2454, 0
      %v2531 = vsel %vm1488, %v2456, 0
      %v2533 = vsel %vm1488, %v2459, 0
      %v2535 = vsel %vm1488, %v2461, 0
      %v2537 = vsel %vm1488, %v2464, 0
      %v2539 = vsel %vm1488, %v2466, 0
      %v2541 = vsel %vm1488, %v2469, 0
      %v2543 = vsel %vm1488, %v2471, 0
      %v2545 = vsel %vm1488, %v2474, 0
      %v2547 = vsel %vm1488, %v2476, 0
      %v2549 = vsel %vm1488, %v2479, 0
      %v2551 = vsel %vm1488, %v2481, 0
      %v2553 = vsel %vm1488, %v2484, 0
      %v2555 = vsel %vm1488, %v2486, 0
      %v2557 = vsel %vm1488, %v2489, 0
      %v2559 = vsel %vm1488, %v2491, 0
      %v2561 = vsel %vm1488, %v2494, 0
      %v2563 = vsel %vm1488, %v2496, 0
      %v2565 = vsel %vm1488, %v2499, 0
      %v2567 = vsel %vm1488, %v2501, 0
      %v2570 = vsel %vm1585, %v2504, 0
      %2572 = vmatprep.subr.mxu0 0.0
      %2573 = vmatpush1.msra.mxu0 %v2503
      %2574 = vmatprep.subr.mxu0 0.0
      %2575 = vmatpush1.msra.mxu0 %v2570
      %2576 = vmatprep.subr.mxu0 0.0
      %2577 = vmatpush1.msra.mxu0 0.0
      %2578 = vmatprep.subr.mxu0 0.0
      %2579 = vmatpush1.msra.mxu0 0.0
      %2580 = vmatprep.subr.mxu0 0.0
      %2581 = vmatpush1.msra.mxu0 0.0
      %2582 = vmatprep.subr.mxu0 0.0
      %2583 = vmatpush1.msra.mxu0 0.0
      %2584 = vmatprep.subr.mxu0 0.0
      %2585 = vmatpush1.msra.mxu0 0.0
      %2586 = vmatprep.subr.mxu0 0.0
      %2587 = vmatpush1.msra.mxu0 0.0
      %2588 = vmatprep.subr.mxu0 0.0
      %2589 = vmatpush1.msra.mxu0 0.0
      %2590 = vmatprep.subr.mxu0 0.0
      %2591 = vmatpush1.msra.mxu0 0.0
      %2592 = vmatprep.subr.mxu0 0.0
      %2593 = vmatpush1.msra.mxu0 0.0
      %2594 = vmatprep.subr.mxu0 0.0
      %2595 = vmatpush1.msra.mxu0 0.0
      %2596 = vmatprep.subr.mxu0 0.0
      %2597 = vmatpush1.msra.mxu0 0.0
      %2598 = vmatprep.subr.mxu0 0.0
      %2599 = vmatpush1.msra.mxu0 0.0
      %2600 = vmatprep.subr.mxu0 0.0
      %2601 = vmatpush1.msra.mxu0 0.0
      %2602 = vmatprep.subr.mxu0 0.0
      %2603 = vmatpush1.msra.mxu0 0.0
      %2604 = vmatprep.subr.mxu0 0.0
      %2605 = vmatpush1.msra.mxu0 0.0
      %2606 = vmatprep.subr.mxu0 0.0
      %2607 = vmatpush1.msra.mxu0 0.0
      %2608 = vmatprep.subr.mxu0 0.0
      %2609 = vmatpush1.msra.mxu0 0.0
      %2610 = vmatprep.subr.mxu0 0.0
      %2611 = vmatpush1.msra.mxu0 0.0
      %2612 = vmatprep.subr.mxu0 0.0
      %2613 = vmatpush1.msra.mxu0 0.0
      %2614 = vmatprep.subr.mxu0 0.0
      %2615 = vmatpush1.msra.mxu0 0.0
      %2616 = vmatprep.subr.mxu0 0.0
      %2617 = vmatpush1.msra.mxu0 0.0
      %2618 = vmatprep.subr.mxu0 0.0
      %2619 = vmatpush1.msra.mxu0 0.0
      %2620 = vmatprep.subr.mxu0 0.0
      %2621 = vmatpush1.msra.mxu0 0.0
      %2622 = vmatprep.subr.mxu0 0.0
      %2623 = vmatpush1.msra.mxu0 0.0
      %2624 = vmatprep.subr.mxu0 0.0
      %2625 = vmatpush1.msra.mxu0 0.0
      %2626 = vmatprep.subr.mxu0 0.0
      %2627 = vmatpush1.msra.mxu0 0.0
      %2628 = vmatprep.subr.mxu0 0.0
      %2629 = vmatpush1.msra.mxu0 0.0
      %2630 = vmatprep.subr.mxu0 0.0
      %2631 = vmatpush1.msra.mxu0 0.0
      %2632 = vmatprep.subr.mxu0 0.0
      %2633 = vmatpush1.msra.mxu0 0.0
      %2634 = vmatprep.subr.mxu0 0.0
      %2635 = vmatpush1.msra.mxu0 0.0
      %2636 = vmatprep.mubr.f32.mxu0 0.0
      %2637 = vmatmul.mubr.f32.gmra.mrb[0].mxu0 %v2505
      %v2638 = vpop.f32.mrb[0].mxu0
      %v2639 = vadd.f32 0.0, %v2638
      %v2640 = vpop.f32.mrb[0].mxu0
      %2641 = vmatprep.mubr.f32.mxu0 0.0
      %2642 = vmatmul.mubr.f32.gmra.mrb[0].mxu0 %v2507
      %v2643 = vpop.f32.mrb[0].mxu0
      %v2644 = vadd.f32 0.0, %v2643
      %v2645 = vpop.f32.mrb[0].mxu0
      %2646 = vmatprep.mubr.f32.mxu0 0.0
      %2647 = vmatmul.mubr.f32.gmra.mrb[0].mxu0 %v2509
      %v2648 = vpop.f32.mrb[0].mxu0
      %v2649 = vadd.f32 0.0, %v2648
      %v2650 = vpop.f32.mrb[0].mxu0
      %2651 = vmatprep.mubr.f32.mxu0 0.0
      %2652 = vmatmul.mubr.f32.gmra.mrb[0].mxu0 %v2511
      %v2653 = vpop.f32.mrb[0].mxu0
      %v2654 = vadd.f32 0.0, %v2653
      %v2655 = vpop.f32.mrb[0].mxu0
      %2656 = vmatprep.mubr.f32.mxu0 0.0
      %2657 = vmatmul.mubr.f32.gmra.mrb[0].mxu0 %v2513
      %v2658 = vpop.f32.mrb[0].mxu0
      %v2659 = vadd.f32 0.0, %v2658
      %v2660 = vpop.f32.mrb[0].mxu0
      %2661 = vmatprep.mubr.f32.mxu0 0.0
      %2662 = vmatmul.mubr.f32.gmra.mrb[0].mxu0 %v2515
      %v2663 = vpop.f32.mrb[0].mxu0
      %v2664 = vadd.f32 0.0, %v2663
      %v2665 = vpop.f32.mrb[0].mxu0
      %2666 = vmatprep.mubr.f32.mxu0 0.0
      %2667 = vmatmul.mubr.f32.gmra.mrb[0].mxu0 %v2517
      %v2668 = vpop.f32.mrb[0].mxu0
      %v2669 = vadd.f32 0.0, %v2668
      %v2670 = vpop.f32.mrb[0].mxu0
      %2671 = vmatprep.mubr.f32.mxu0 0.0
      %2672 = vmatmul.mubr.f32.gmra.mrb[0].mxu0 %v2519
      %v2673 = vpop.f32.mrb[0].mxu0
      %v2674 = vadd.f32 0.0, %v2673
      %v2675 = vpop.f32.mrb[0].mxu0
      %2676 = vmatprep.mubr.f32.mxu0 0.0
      %2677 = vmatmul.mubr.f32.gmra.mrb[0].mxu0 %v2521
      %v2678 = vpop.f32.mrb[0].mxu0
      %v2679 = vadd.f32 0.0, %v2678
      %v2680 = vpop.f32.mrb[0].mxu0
      %2681 = vmatprep.mubr.f32.mxu0 0.0
      %2682 = vmatmul.mubr.f32.gmra.mrb[0].mxu0 %v2523
      %v2683 = vpop.f32.mrb[0].mxu0
      %v2684 = vadd.f32 0.0, %v2683
      %v2685 = vpop.f32.mrb[0].mxu0
      %2686 = vmatprep.mubr.f32.mxu0 0.0
      %2687 = vmatmul.mubr.f32.gmra.mrb[0].mxu0 %v2525
      %v2688 = vpop.f32.mrb[0].mxu0
      %v2689 = vadd.f32 0.0, %v2688
      %v2690 = vpop.f32.mrb[0].mxu0
      %2691 = vmatprep.mubr.f32.mxu0 0.0
      %2692 = vmatmul.mubr.f32.gmra.mrb[0].mxu0 %v2527
      %v2693 = vpop.f32.mrb[0].mxu0
      %v2694 = vadd.f32 0.0, %v2693
      %v2695 = vpop.f32.mrb[0].mxu0
      %2696 = vmatprep.mubr.f32.mxu0 0.0
      %2697 = vmatmul.mubr.f32.gmra.mrb[0].mxu0 %v2529
      %v2698 = vpop.f32.mrb[0].mxu0
      %v2699 = vadd.f32 0.0, %v2698
      %v2700 = vpop.f32.mrb[0].mxu0
      %2701 = vmatprep.mubr.f32.mxu0 0.0
      %2702 = vmatmul.mubr.f32.gmra.mrb[0].mxu0 %v2531
      %v2703 = vpop.f32.mrb[0].mxu0
      %v2704 = vadd.f32 0.0, %v2703
      %v2705 = vpop.f32.mrb[0].mxu0
      %2706 = vmatprep.mubr.f32.mxu0 0.0
      %2707 = vmatmul.mubr.f32.gmra.mrb[0].mxu0 %v2533
      %v2708 = vpop.f32.mrb[0].mxu0
      %v2709 = vadd.f32 0.0, %v2708
      %v2710 = vpop.f32.mrb[0].mxu0
      %2711 = vmatprep.mubr.f32.mxu0 0.0
      %2712 = vmatmul.mubr.f32.gmra.mrb[0].mxu0 %v2535
      %v2713 = vpop.f32.mrb[0].mxu0
      %v2714 = vadd.f32 0.0, %v2713
      %v2715 = vpop.f32.mrb[0].mxu0
      %2716 = vmatprep.mubr.f32.mxu0 0.0
      %2717 = vmatmul.mubr.f32.gmra.mrb[0].mxu0 %v2537
      %v2718 = vpop.f32.mrb[0].mxu0
      %v2719 = vadd.f32 0.0, %v2718
      %v2720 = vpop.f32.mrb[0].mxu0
      %2721 = vmatprep.mubr.f32.mxu0 0.0
      %2722 = vmatmul.mubr.f32.gmra.mrb[0].mxu0 %v2539
      %v2723 = vpop.f32.mrb[0].mxu0
      %v2724 = vadd.f32 0.0, %v2723
      %v2725 = vpop.f32.mrb[0].mxu0
      %2726 = vmatprep.mubr.f32.mxu0 0.0
      %2727 = vmatmul.mubr.f32.gmra.mrb[0].mxu0 %v2541
      %v2728 = vpop.f32.mrb[0].mxu0
      %v2729 = vadd.f32 0.0, %v2728
      %v2730 = vpop.f32.mrb[0].mxu0
      %2731 = vmatprep.mubr.f32.mxu0 0.0
      %2732 = vmatmul.mubr.f32.gmra.mrb[0].mxu0 %v2543
      %v2733 = vpop.f32.mrb[0].mxu0
      %v2734 = vadd.f32 0.0, %v2733
      %v2735 = vpop.f32.mrb[0].mxu0
      %2736 = vmatprep.mubr.f32.mxu0 0.0
      %2737 = vmatmul.mubr.f32.gmra.mrb[0].mxu0 %v2545
      %v2738 = vpop.f32.mrb[0].mxu0
      %v2739 = vadd.f32 0.0, %v2738
      %v2740 = vpop.f32.mrb[0].mxu0
      %2741 = vmatprep.mubr.f32.mxu0 0.0
      %2742 = vmatmul.mubr.f32.gmra.mrb[0].mxu0 %v2547
      %v2743 = vpop.f32.mrb[0].mxu0
      %v2744 = vadd.f32 0.0, %v2743
      %v2745 = vpop.f32.mrb[0].mxu0
      %2746 = vmatprep.mubr.f32.mxu0 0.0
      %2747 = vmatmul.mubr.f32.gmra.mrb[0].mxu0 %v2549
      %v2748 = vpop.f32.mrb[0].mxu0
      %v2749 = vadd.f32 0.0, %v2748
      %v2750 = vpop.f32.mrb[0].mxu0
      %2751 = vmatprep.mubr.f32.mxu0 0.0
      %2752 = vmatmul.mubr.f32.gmra.mrb[0].mxu0 %v2551
      %v2753 = vpop.f32.mrb[0].mxu0
      %v2754 = vadd.f32 0.0, %v2753
      %v2755 = vpop.f32.mrb[0].mxu0
      %2756 = vmatprep.mubr.f32.mxu0 0.0
      %2757 = vmatmul.mubr.f32.gmra.mrb[0].mxu0 %v2553
      %v2758 = vpop.f32.mrb[0].mxu0
      %v2759 = vadd.f32 0.0, %v2758
      %v2760 = vpop.f32.mrb[0].mxu0
      %2761 = vmatprep.mubr.f32.mxu0 0.0
      %2762 = vmatmul.mubr.f32.gmra.mrb[0].mxu0 %v2555
      %v2763 = vpop.f32.mrb[0].mxu0
      %v2764 = vadd.f32 0.0, %v2763
      %v2765 = vpop.f32.mrb[0].mxu0
      %2766 = vmatprep.mubr.f32.mxu0 0.0
      %2767 = vmatmul.mubr.f32.gmra.mrb[0].mxu0 %v2557
      %v2768 = vpop.f32.mrb[0].mxu0
      %v2769 = vadd.f32 0.0, %v2768
      %v2770 = vpop.f32.mrb[0].mxu0
      %2771 = vmatprep.mubr.f32.mxu0 0.0
      %2772 = vmatmul.mubr.f32.gmra.mrb[0].mxu0 %v2559
      %v2773 = vpop.f32.mrb[0].mxu0
      %v2774 = vadd.f32 0.0, %v2773
      %v2775 = vpop.f32.mrb[0].mxu0
      %2776 = vmatprep.mubr.f32.mxu0 0.0
      %2777 = vmatmul.mubr.f32.gmra.mrb[0].mxu0 %v2561
      %v2778 = vpop.f32.mrb[0].mxu0
      %v2779 = vadd.f32 0.0, %v2778
      %v2780 = vpop.f32.mrb[0].mxu0
      %2781 = vmatprep.mubr.f32.mxu0 0.0
      %2782 = vmatmul.mubr.f32.gmra.mrb[0].mxu0 %v2563
      %v2783 = vpop.f32.mrb[0].mxu0
      %v2784 = vadd.f32 0.0, %v2783
      %v2785 = vpop.f32.mrb[0].mxu0
      %2786 = vmatprep.mubr.f32.mxu0 0.0
      %2787 = vmatmul.mubr.f32.gmra.mrb[0].mxu0 %v2565
      %v2788 = vpop.f32.mrb[0].mxu0
      %v2789 = vadd.f32 0.0, %v2788
      %v2790 = vpop.f32.mrb[0].mxu0
      %2791 = vmatprep.mubr.f32.mxu0 0.0
      %2792 = vmatmul.mubr.f32.gmra.mrb[0].mxu0 %v2567
      %v2793 = vpop.f32.mrb[0].mxu0
      %v2794 = vadd.f32 0.0, %v2793
      %v2795 = vpop.f32.mrb[0].mxu0
      %2796 = vdwg.mxu0
      %v2797 = vadd.f32 %v2389, %v2639
      %v2798 = vadd.f32 %v2390, %v2644
      %v2799 = vadd.f32 %v2391, %v2649
      %v2800 = vadd.f32 %v2392, %v2654
      %v2801 = vadd.f32 %v2393, %v2659
      %v2802 = vadd.f32 %v2394, %v2664
      %v2803 = vadd.f32 %v2395, %v2669
      %v2804 = vadd.f32 %v2396, %v2674
      %v2805 = vadd.f32 %v2397, %v2679
      %v2806 = vadd.f32 %v2398, %v2684
      %v2807 = vadd.f32 %v2399, %v2689
      %v2808 = vadd.f32 %v2400, %v2694
      %v2809 = vadd.f32 %v2401, %v2699
      %v2810 = vadd.f32 %v2402, %v2704
      %v2811 = vadd.f32 %v2403, %v2709
      %v2812 = vadd.f32 %v2404, %v2714
      %v2813 = vadd.f32 %v2405, %v2719
      %v2814 = vadd.f32 %v2406, %v2724
      %v2815 = vadd.f32 %v2407, %v2729
      %v2816 = vadd.f32 %v2408, %v2734
      %v2817 = vadd.f32 %v2409, %v2739
      %v2818 = vadd.f32 %v2410, %v2744
      %v2819 = vadd.f32 %v2411, %v2749
      %v2820 = vadd.f32 %v2412, %v2754
      %v2821 = vadd.f32 %v2413, %v2759
      %v2822 = vadd.f32 %v2414, %v2764
      %v2823 = vadd.f32 %v2415, %v2769
      %v2824 = vadd.f32 %v2416, %v2774
      %v2825 = vadd.f32 %v2417, %v2779
      %v2826 = vadd.f32 %v2418, %v2784
      %v2827 = vadd.f32 %v2419, %v2789
      %v2828 = vadd.f32 %v2420, %v2794
      %v2829 = vld [vmem:[%s346] sm:$0x1]
      %v2831 = vlaneseq
      %v2832 = vshrl.u32 %v2831, 7
      %v2833 = vsub.s32 0, %v2832
      %v2834 = vrot.slane %v2829, %v2833
      %v2836 = vadd.f32 %v2797, %v2834
      %v2837 = vadd.f32 %v2798, %v2834
      %v2838 = vadd.f32 %v2799, %v2834
      %v2839 = vadd.f32 %v2800, %v2834
      %v2840 = vadd.f32 %v2801, %v2834
      %v2841 = vadd.f32 %v2802, %v2834
      %v2842 = vadd.f32 %v2803, %v2834
      %v2843 = vadd.f32 %v2804, %v2834
      %v2844 = vadd.f32 %v2805, %v2834
      %v2845 = vadd.f32 %v2806, %v2834
      %v2846 = vadd.f32 %v2807, %v2834
      %v2847 = vadd.f32 %v2808, %v2834
      %v2848 = vadd.f32 %v2809, %v2834
      %v2849 = vadd.f32 %v2810, %v2834
      %v2850 = vadd.f32 %v2811, %v2834
      %v2851 = vadd.f32 %v2812, %v2834
      %v2852 = vadd.f32 %v2813, %v2834
      %v2853 = vadd.f32 %v2814, %v2834
      %v2854 = vadd.f32 %v2815, %v2834
      %v2855 = vadd.f32 %v2816, %v2834
      %v2856 = vadd.f32 %v2817, %v2834
      %v2857 = vadd.f32 %v2818, %v2834
      %v2858 = vadd.f32 %v2819, %v2834
      %v2859 = vadd.f32 %v2820, %v2834
      %v2860 = vadd.f32 %v2821, %v2834
      %v2861 = vadd.f32 %v2822, %v2834
      %v2862 = vadd.f32 %v2823, %v2834
      %v2863 = vadd.f32 %v2824, %v2834
      %v2864 = vadd.f32 %v2825, %v2834
      %v2865 = vadd.f32 %v2826, %v2834
      %v2866 = vadd.f32 %v2827, %v2834
      %v2867 = vadd.f32 %v2828, %v2834
      %2868 = vst.msk [vmem:[%s354] sm:$0xff] %vm1420, %v2836
      %2869 = vst.msk [vmem:[%s354 + $0x8] sm:$0xff] %vm1420, %v2837
      %2870 = vst.msk [vmem:[%s354 + $0x10] sm:$0xff] %vm1420, %v2838
      %2871 = vst.msk [vmem:[%s354 + $0x18] sm:$0xff] %vm1420, %v2839
      %2872 = vst.msk [vmem:[%s354 + $0x20] sm:$0xff] %vm1420, %v2840
      %2873 = vst.msk [vmem:[%s354 + $0x28] sm:$0xff] %vm1420, %v2841
      %2874 = vst.msk [vmem:[%s354 + $0x30] sm:$0xff] %vm1420, %v2842
      %2875 = vst.msk [vmem:[%s354 + $0x38] sm:$0xff] %vm1420, %v2843
      %2876 = vst.msk [vmem:[%s354 + $0x40] sm:$0xff] %vm1420, %v2844
      %2877 = vst.msk [vmem:[%s354 + $0x48] sm:$0xff] %vm1420, %v2845
      %2878 = vst.msk [vmem:[%s354 + $0x50] sm:$0xff] %vm1420, %v2846
      %2879 = vst.msk [vmem:[%s354 + $0x58] sm:$0xff] %vm1420, %v2847
      %2880 = vst.msk [vmem:[%s354 + $0x60] sm:$0xff] %vm1420, %v2848
      %2881 = vst.msk [vmem:[%s354 + $0x68] sm:$0xff] %vm1420, %v2849
      %2882 = vst.msk [vmem:[%s354 + $0x70] sm:$0xff] %vm1420, %v2850
      %2883 = vst.msk [vmem:[%s354 + $0x78] sm:$0xff] %vm1420, %v2851
      %2884 = vst.msk [vmem:[%s354 + $0x80] sm:$0xff] %vm1420, %v2852
      %2885 = vst.msk [vmem:[%s354 + $0x88] sm:$0xff] %vm1420, %v2853
      %2886 = vst.msk [vmem:[%s354 + $0x90] sm:$0xff] %vm1420, %v2854
      %2887 = vst.msk [vmem:[%s354 + $0x98] sm:$0xff] %vm1420, %v2855
      %2888 = vst.msk [vmem:[%s354 + $0xa0] sm:$0xff] %vm1420, %v2856
      %2889 = vst.msk [vmem:[%s354 + $0xa8] sm:$0xff] %vm1420, %v2857
      %2890 = vst.msk [vmem:[%s354 + $0xb0] sm:$0xff] %vm1420, %v2858
      %2891 = vst.msk [vmem:[%s354 + $0xb8] sm:$0xff] %vm1420, %v2859
      %2892 = vst.msk [vmem:[%s354 + $0xc0] sm:$0xff] %vm1420, %v2860
      %2893 = vst.msk [vmem:[%s354 + $0xc8] sm:$0xff] %vm1420, %v2861
      %2894 = vst.msk [vmem:[%s354 + $0xd0] sm:$0xff] %vm1420, %v2862
      %2895 = vst.msk [vmem:[%s354 + $0xd8] sm:$0xff] %vm1420, %v2863
      %2896 = vst.msk [vmem:[%s354 + $0xe0] sm:$0xff] %vm1420, %v2864
      %2897 = vst.msk [vmem:[%s354 + $0xe8] sm:$0xff] %vm1420, %v2865
      %2898 = vst.msk [vmem:[%s354 + $0xf0] sm:$0xff] %vm1420, %v2866
      %2899 = vst.msk [vmem:[%s354 + $0xf8] sm:$0xff] %vm1420, %v2867
      %p2900 = scmp.lt.s32.totalorder %s22, 1
      %s2901 = scalar_select %p2900, %s22, 1
      %p2902 = scmp.lt.s32.totalorder %s23, 0
      %s2903 = scalar_select %p2902, %s23, 0
      %s2904 = smul.addr %s2901, 32
      %s2905 = sadd.s32 %s2903, %s2904
      %s2906 = smul.addr %s2905, 8
      %s2907 = scalar_lea.vmem %s7, %s2906
      // Predicated region
      $region53: #{tpu_custom_call.1} parent=47 // pred_check
        %p2908 = pneg %p219
      $region54: #{tpu_custom_call.1} parent=47 // pred_check_branch
        %2910 = sbr.rel (%p2908) target = $region56
      $region55: #{tpu_custom_call.1} parent=47 // pred_region
        _
      $region56: #{tpu_custom_call.1} parent=47 // pred_fallthru
        _
    $region48: #{tpu_custom_call.1} parent=5 // pred_fallthru
      _
    %p2911 = scmp.le.s32.totalorder 2, %s13
    // Predicated region
    $region57: #{tpu_custom_call.1} parent=5 // pred_check
      %p2912 = pneg %p2911
    $region58: #{tpu_custom_call.1} parent=5 // pred_check_branch
      %2914 = sbr.rel (%p2912) target = $region60
    $region59: #{tpu_custom_call.1} parent=5 // pred_region
      %s2915 = ssub.s32 %s13, 2
      // Predicated region
      $region61: #{tpu_custom_call.1} parent=59 // pred_check
        %p2916 = pneg %p225
      $region62: #{tpu_custom_call.1} parent=59 // pred_check_branch
        %2918 = sbr.rel (%p2916) target = $region64
      $region63: #{tpu_custom_call.1} parent=59 // pred_region
        %p2919 = scmp.lt.s32.totalorder %s24, 1
        %s2920 = scalar_select %p2919, %s24, 1
        %p2921 = scmp.lt.s32.totalorder %s25, 0
        %s2922 = scalar_select %p2921, %s25, 0
        %s2923 = smul.addr %s2920, 32
        %s2924 = sadd.s32 %s2922, %s2923
        %s2925 = smul.addr %s2924, 8
        %s2926 = scalar_lea.vmem %s7, %s2925
      $region64: #{tpu_custom_call.1} parent=59 // pred_fallthru
        _
    $region60: #{tpu_custom_call.1} parent=5 // pred_fallthru
      _
  $region6: #{tpu_custom_call.1} parent=0 // loop_footer
    %s17 = sadd.s32 1, %s13
  $region7: #{tpu_custom_call.1} parent=0 // loop_footer_branch
    %12 = sbr.rel target = $region3
  $region8: #{tpu_custom_call.1} parent=0 // loop_exit
    _

</llo_original>
